<compile_context>
chip_gen: v7x
topology: tpu7x:2x2x1
jax: 0.10.0
libtpu: 0.0.40
codegen_flags: <defaults>
</compile_context>

<pallas_src>
import numpy as np

import jax
import jax.numpy as jnp
from jax.experimental import pallas as pl
from jax.experimental.pallas import tpu as pltpu

# ----------------------------- config (mirrors args / maps) ------------------
DOMAIN_SLOT_LIST = ["hotel-name", "restaurant-food", "train-day"]
DOMAIN_SLOT_TYPE_MAP = {
    "hotel-name": "span",
    "restaurant-food": "classify",
    "train-day": "classify",
}
SLOT_NUM_VALUE = {"restaurant-food": 6, "train-day": 7}  # no_value_assign_strategy == 'miss'
MENTIONED_SLOT_POOL_SIZE = 8      # P
EMBED_DIM = 32                    # encoder_d_model (small synthetic size)
ATTN_DIM = 16                     # hidden dim of the query/key MLPs
VOCAB = 64
BATCH = 2                         # B
SEQ = 8                           # S

NUM_SLOTS = len(DOMAIN_SLOT_LIST)
HIT_PAD = 8                       # hit-head out dims (2 / 6 / 7) padded to 8
HEAD_ROWS = 8                     # gate+mentioned rows padded to a sublane multiple
OUT_LANES = 128                   # lane-dense output slab width
W_ROWS = 6 * EMBED_DIM            # packed per-slot weight slab rows (6 blocks of 32)
B_ROWS = 8                        # packed per-slot bias slab rows

F32 = jnp.float32

assert EMBED_DIM == 2 * ATTN_DIM, "weight packing assumes D == 2 * attn hidden"
assert 4 + MENTIONED_SLOT_POOL_SIZE + 0 <= OUT_LANES
assert BATCH <= HEAD_ROWS


# ----------------------------- fused Pallas kernel ----------------------------
def fused_slot_kernel(ctxq_ref, enc_ref, ment_ref, mask_ref, w_ref, b_ref, out_ref):
    """One grid step == one domain-slot.

    ctxq_ref : [2B, D]   rows 0:B = encode[:,0,:] (gate ctx), rows B:2B = encode[:,2,:]
    enc_ref  : [B*S, D]  all token embeddings (value head)
    ment_ref : [B, P, D] mentioned-slot pool embeddings for this slot
    mask_ref : [B, P]    1.0 valid / 0.0 padded
    w_ref    : [192, 32] packed weights: q1 | q2(bd) | k1 | k2(bd) | mc(ext) | gp+hit
    b_ref    : [8, 32]   packed biases (same order, rows 6,7 zero)
    out_ref  : [HEAD_ROWS + B*S, 128] lane-dense output slab:
               rows 0:B   lanes 0:4   -> gate logits
                          lanes 4:4+P -> mentioned-slot scores
               rows 8:8+B*S lanes 0:8 -> value-head logits (padded)
    """
    ctxq = ctxq_ref[...]
    enc = enc_ref[...]
    ment = ment_ref[...]
    mask = mask_ref[...]
    w = w_ref[...]
    bias = b_ref[...]

    two_b, d = ctxq.shape
    b = two_b // 2
    p = ment.shape[1]
    n_tok = enc.shape[0]
    h2 = w.shape[1]                       # 2 * ATTN_DIM

    w_q1 = w[0 * d:1 * d, :]
    w_q2 = w[1 * d:2 * d, :]
    w_k1 = w[2 * d:3 * d, :]
    w_k2 = w[3 * d:4 * d, :]
    w_mc = w[4 * d:5 * d, :]
    w_oh = w[5 * d:6 * d, :]              # lanes 0:4 gate_predict, 4:12 hit head
    b_q1 = bias[0:1, :]
    b_q2 = bias[1:2, :]
    b_k1 = bias[2:3, :]
    b_k2 = bias[3:4, :]
    b_mc = bias[4:5, :]
    b_oh = bias[5:6, :]

    # fused query MLPs: lanes 0:16 gate path, lanes 16:32 mentioned path
    h = jnp.maximum(jnp.dot(ctxq, w_q1, preferred_element_type=F32) + b_q1, 0.0)
    q = jnp.maximum(jnp.dot(h, w_q2, preferred_element_type=F32) + b_q2, 0.0)   # [2B, 32]

    lane = jax.lax.broadcasted_iota(jnp.int32, (1, h2), 1)
    gate_lane_mask = (lane < (h2 // 2)).astype(F32)                             # [1, 32]
    qg = q[0:b, :] * gate_lane_mask       # gate query (mentioned half zeroed)
    qm = q[b:two_b, :]                    # mentioned query (only lanes 16:32 hit non-zeros)

    # additive mask term: matches `~mask * -1e6 + score`
    neg = jnp.where(mask > 0.0, 0.0, -1000000.0)                                # [B, P]

    # value head on every token (lanes 4:12 of w_oh carry the padded hit weight)
    vo = jnp.dot(enc, w_oh, preferred_element_type=F32) + b_oh                  # [B*S, 32]

    # init the full slab once (padding rows stay zero), then overwrite used rows
    out_ref[...] = jnp.zeros_like(out_ref)

    for bi in range(b):                   # B == 2, statically unrolled
        m_b = ment[bi]                                                           # [P, D]
        k1 = jnp.maximum(jnp.dot(m_b, w_k1, preferred_element_type=F32) + b_k1, 0.0)
        k2 = jnp.maximum(jnp.dot(k1, w_k2, preferred_element_type=F32) + b_k2, 0.0)   # [P, 32]
        km = jnp.dot(k2, w_mc, preferred_element_type=F32) + b_mc                     # [P, 32] (lanes 16:32)

        neg_b = neg[bi:bi + 1, :]                                                # [1, P]
        g_score = jnp.dot(qg[bi:bi + 1, :], k2.T,
                          preferred_element_type=F32) + neg_b                   # [1, P]
        m_score = jnp.dot(qm[bi:bi + 1, :], km.T,
                          preferred_element_type=F32) + neg_b                   # [1, P]

        # softmax over the pool, reciprocal on the EUP
        g_max = jnp.max(g_score, axis=-1, keepdims=True)
        g_exp = jnp.exp(g_score - g_max)
        g_w = g_exp * pl.reciprocal(jnp.sum(g_exp, axis=-1, keepdims=True), approx=True)

        pooled = jnp.dot(g_w, m_b, preferred_element_type=F32)                  # [1, D]
        emb = pooled + ctxq[bi:bi + 1, :]                                        # + encode[bi,0,:]
        go = jnp.dot(emb, w_oh, preferred_element_type=F32) + b_oh              # [1, 32] (lanes 0:4)

        head_row = jnp.concatenate(
            [go[:, 0:4], m_score, jnp.zeros((1, OUT_LANES - 4 - p), F32)], axis=-1)
        out_ref[bi:bi + 1, :] = head_row                                         # full-lane store

    vrows = jnp.concatenate(
        [vo[:, 4:4 + HIT_PAD], jnp.zeros((n_tok, OUT_LANES - HIT_PAD), F32)], axis=-1)
    out_ref[HEAD_ROWS:HEAD_ROWS + n_tok, :] = vrows                              # aligned full store


# ----------------------------- parameter init / packing -----------------------
def _linear_params(key, in_dim, out_dim):
    kw, kb = jax.random.split(key)
    w = jax.random.normal(kw, (in_dim, out_dim), F32) * 0.05
    b = jax.random.normal(kb, (1, out_dim), F32) * 0.01
    return w, b


def init_model_params(key):
    """Raw params, mirroring the PyTorch ModuleDicts."""
    params = {"token_embedding": None, "slots": {}}
    key, ek = jax.random.split(key)
    params["token_embedding"] = jax.random.normal(ek, (VOCAB, EMBED_DIM), F32) * 0.1
    for ds in DOMAIN_SLOT_LIST:
        key, *ks = jax.random.split(key, 13)
        p = {}
        p["gq_w1"], p["gq_b1"] = _linear_params(ks[0], EMBED_DIM, ATTN_DIM)
        p["gq_w2"], p["gq_b2"] = _linear_params(ks[1], ATTN_DIM, ATTN_DIM)
        p["gk_w1"], p["gk_b1"] = _linear_params(ks[2], EMBED_DIM, ATTN_DIM)
        p["gk_w2"], p["gk_b2"] = _linear_params(ks[3], ATTN_DIM, ATTN_DIM)
        p["gp_w"], p["gp_b"] = _linear_params(ks[4], EMBED_DIM, 4)
        p["mq_w1"], p["mq_b1"] = _linear_params(ks[5], EMBED_DIM, ATTN_DIM)
        p["mq_w2"], p["mq_b2"] = _linear_params(ks[6], ATTN_DIM, ATTN_DIM)
        p["ms_w1"], p["ms_b1"] = _linear_params(ks[7], EMBED_DIM, ATTN_DIM)
        p["ms_w2"], p["ms_b2"] = _linear_params(ks[8], ATTN_DIM, ATTN_DIM)
        p["mc_w"], p["mc_b"] = _linear_params(ks[9], ATTN_DIM, ATTN_DIM)
        out_dim = SLOT_NUM_VALUE[ds] if DOMAIN_SLOT_TYPE_MAP[ds] == "classify" else 2
        p["hit_w"], p["hit_b"] = _linear_params(ks[10], EMBED_DIM, out_dim)
        params["slots"][ds] = p
    return params


def _block_diag(a, b):
    za = jnp.zeros((a.shape[0], b.shape[1]), F32)
    zb = jnp.zeros((b.shape[0], a.shape[1]), F32)
    return jnp.concatenate(
        [jnp.concatenate([a, za], axis=1), jnp.concatenate([zb, b], axis=1)], axis=0)


def pack_slot_params(params):
    """Pack per-slot weights into [NS,192,32] and biases into [NS,8,32]."""
    h2 = 2 * ATTN_DIM
    w_list, b_list = [], []
    for ds in DOMAIN_SLOT_LIST:
        p = params["slots"][ds]
        out_dim = p["hit_w"].shape[1]

        w_q1 = jnp.concatenate([p["gq_w1"], p["mq_w1"]], axis=1)            # [D, 32]
        w_q2 = _block_diag(p["gq_w2"], p["mq_w2"])                           # [32, 32]
        w_k1 = jnp.concatenate([p["gk_w1"], p["ms_w1"]], axis=1)             # [D, 32]
        w_k2 = _block_diag(p["gk_w2"], p["ms_w2"])                           # [32, 32]
        w_mc = jnp.zeros((h2, h2), F32).at[ATTN_DIM:, ATTN_DIM:].set(p["mc_w"])
        w_oh = (jnp.zeros((EMBED_DIM, h2), F32)
                .at[:, 0:4].set(p["gp_w"])
                .at[:, 4:4 + out_dim].set(p["hit_w"]))
        w_list.append(jnp.concatenate([w_q1, w_q2, w_k1, w_k2, w_mc, w_oh], axis=0))

        b_q1 = jnp.concatenate([p["gq_b1"], p["mq_b1"]], axis=1)
        b_q2 = jnp.concatenate([p["gq_b2"], p["mq_b2"]], axis=1)
        b_k1 = jnp.concatenate([p["gk_b1"], p["ms_b1"]], axis=1)
        b_k2 = jnp.concatenate([p["gk_b2"], p["ms_b2"]], axis=1)
        b_mc = jnp.zeros((1, h2), F32).at[:, ATTN_DIM:].set(p["mc_b"])
        b_oh = (jnp.zeros((1, h2), F32)
                .at[:, 0:4].set(p["gp_b"])
                .at[:, 4:4 + out_dim].set(p["hit_b"]))
        b_list.append(jnp.concatenate(
            [b_q1, b_q2, b_k1, b_k2, b_mc, b_oh, jnp.zeros((2, h2), F32)], axis=0))
    return jnp.stack(w_list), jnp.stack(b_list)


# ----------------------------- forward ----------------------------------------
@jax.jit
def history_selection_forward(token_embedding, w_all, b_all,
                              context_token, context_mask, ment_all, mask_all):
    # TODO(synk): pretrained transformer encoder not reproduced (embedding lookup stand-in).
    encode = token_embedding[context_token] * context_mask[:, :, None].astype(F32)  # [B,S,D]
    b, s, d = encode.shape
    ns, _, p, _ = ment_all.shape
    out_rows = HEAD_ROWS + b * s

    ctx_stack = jnp.concatenate([encode[:, 0, :], encode[:, 2, :]], axis=0)          # [2B, D]
    enc_flat = encode.reshape(b * s, d)                                              # [B*S, D]

    out = pl.pallas_call(
        fused_slot_kernel,
        out_shape=jax.ShapeDtypeStruct((ns, out_rows, OUT_LANES), F32),
        grid=(ns,),
        in_specs=[
            pl.BlockSpec((2 * b, d), lambda i: (0, 0)),                  # shared ctx rows
            pl.BlockSpec((b * s, d), lambda i: (0, 0)),                  # shared token rows
            pl.BlockSpec((None, b, p, d), lambda i: (i, 0, 0, 0)),       # per-slot pool
            pl.BlockSpec((None, b, p), lambda i: (i, 0, 0)),             # per-slot mask
            pl.BlockSpec((None, W_ROWS, 2 * ATTN_DIM), lambda i: (i, 0, 0)),  # packed W
            pl.BlockSpec((None, B_ROWS, 2 * ATTN_DIM), lambda i: (i, 0, 0)),  # packed b
        ],
        out_specs=pl.BlockSpec((None, out_rows, OUT_LANES), lambda i: (i, 0, 0)),
        compiler_params=pltpu.CompilerParams(dimension_semantics=("parallel",)),
    )(ctx_stack, enc_flat, ment_all, mask_all, w_all, b_all)

    # slice the lane-dense slab apart (plain XLA slices outside the kernel)
    gate_all = out[:, 0:b, 0:4]                                   # [NS, B, 4]
    ment_score_all = out[:, 0:b, 4:4 + p]                         # [NS, B, P]
    value_all = out[:, HEAD_ROWS:HEAD_ROWS + b * s, 0:HIT_PAD].reshape(ns, b, s, HIT_PAD)

    predict_gate_dict, predict_value_dict, predict_mentioned_slot_dict = {}, {}, {}
    for idx, ds in enumerate(DOMAIN_SLOT_LIST):
        predict_gate_dict[ds] = gate_all[idx]
        predict_mentioned_slot_dict[ds] = ment_score_all[idx]
        if DOMAIN_SLOT_TYPE_MAP[ds] == "classify":
            nv = SLOT_NUM_VALUE[ds]
            predict_value_dict[ds] = value_all[idx, :, 1, :nv]     # Linear(encode[:,1,:])
        else:  # span: Linear over every token
            predict_value_dict[ds] = value_all[idx, :, :, :2]
    return predict_gate_dict, predict_value_dict, predict_mentioned_slot_dict


# ----------------------------- pure-JAX reference (for checking) --------------
def reference_forward(params, context_token, context_mask, ment_dict, mask_dict):
    emb_table = params["token_embedding"]
    encode = emb_table[context_token] * context_mask[:, :, None].astype(F32)
    ctx0, ctx1, ctx2 = encode[:, 0, :], encode[:, 1, :], encode[:, 2, :]

    def mlp(x, w1, b1, w2, b2):
        h = jnp.maximum(x @ w1 + b1, 0.0)
        return jnp.maximum(h @ w2 + b2, 0.0)

    gate_d, value_d, ment_d = {}, {}, {}
    for ds in DOMAIN_SLOT_LIST:
        p = params["slots"][ds]
        ment = ment_dict[ds]
        mask = mask_dict[ds]
        neg = (1.0 - mask) * (-1000000.0)

        qg = mlp(ctx0, p["gq_w1"], p["gq_b1"], p["gq_w2"], p["gq_b2"])
        kg = mlp(ment, p["gk_w1"], p["gk_b1"], p["gk_w2"], p["gk_b2"])
        score = jnp.einsum("bpk,bk->bp", kg, qg) + neg
        w = jax.nn.softmax(score, axis=1)
        pooled = jnp.einsum("bpd,bp->bd", ment, w)
        gate_d[ds] = (pooled + ctx0) @ p["gp_w"] + p["gp_b"]

        qm = mlp(ctx2, p["mq_w1"], p["mq_b1"], p["mq_w2"], p["mq_b2"])
        km = mlp(ment, p["ms_w1"], p["ms_b1"], p["ms_w2"], p["ms_b2"]) @ p["mc_w"] + p["mc_b"]
        ment_d[ds] = jnp.einsum("bpk,bk->bp", km, qm) + neg

        if DOMAIN_SLOT_TYPE_MAP[ds] == "classify":
            value_d[ds] = ctx1 @ p["hit_w"] + p["hit_b"]
        else:
            value_d[ds] = encode @ p["hit_w"] + p["hit_b"]
    return gate_d, value_d, ment_d


# ----------------------------- main -------------------------------------------
if __name__ == "__main__":
    root = jax.random.PRNGKey(0)
    k_param, k_tok, k_ment = jax.random.split(root, 3)

    params = init_model_params(k_param)
    w_all, b_all = pack_slot_params(params)

    context_token = jax.random.randint(k_tok, (BATCH, SEQ), 0, VOCAB, dtype=jnp.int32)
    context_mask = jnp.ones((BATCH, SEQ), dtype=jnp.int32)

    ment_dict, mask_dict, ment_list, mask_list = {}, {}, [], []
    for i, ds in enumerate(DOMAIN_SLOT_LIST):
        ke = jax.random.fold_in(k_ment, i)
        emb = jax.random.normal(ke, (BATCH, MENTIONED_SLOT_POOL_SIZE, EMBED_DIM), F32)
        valid = (jnp.arange(MENTIONED_SLOT_POOL_SIZE) < (i + 2)).astype(F32)
        msk = jnp.broadcast_to(valid, (BATCH, MENTIONED_SLOT_POOL_SIZE))
        ment_dict[ds], mask_dict[ds] = emb, msk
        ment_list.append(emb)
        mask_list.append(msk)
    ment_all = jnp.stack(ment_list)   # [NS, B, P, D]
    mask_all = jnp.stack(mask_list)   # [NS, B, P]

    gate_d, value_d, ment_d = history_selection_forward(
        params["token_embedding"], w_all, b_all,
        context_token, context_mask, ment_all, mask_all)
    jax.block_until_ready((gate_d, value_d, ment_d))

    # shape checks
    assert gate_d["hotel-name"].shape == (BATCH, 4)
    assert ment_d["hotel-name"].shape == (BATCH, MENTIONED_SLOT_POOL_SIZE)
    assert value_d["hotel-name"].shape == (BATCH, SEQ, 2)
    assert value_d["restaurant-food"].shape == (BATCH, SLOT_NUM_VALUE["restaurant-food"])
    assert value_d["train-day"].shape == (BATCH, SLOT_NUM_VALUE["train-day"])

    # numerics vs. pure-JAX reference (loose tol: pl.reciprocal(approx=True))
    ref_gate, ref_value, ref_ment = reference_forward(
        params, context_token, context_mask, ment_dict, mask_dict)
    for ds in DOMAIN_SLOT_LIST:
        np.testing.assert_allclose(np.asarray(gate_d[ds]), np.asarray(ref_gate[ds]),
                                   rtol=2e-2, atol=2e-2)
        np.testing.assert_allclose(np.asarray(value_d[ds]), np.asarray(ref_value[ds]),
                                   rtol=2e-2, atol=2e-2)
        np.testing.assert_allclose(np.asarray(ment_d[ds]), np.asarray(ref_ment[ds]),
                                   rtol=2e-2, atol=2e-2)

    print("KERNEL_OK")
</pallas_src>

<mosaic_0001>
module attributes {stable_mosaic.version = 11 : i64} {
  func.func @fused_slot_kernel(%arg0: i32, %arg1: memref<4x32xf32, #tpu.memory_space<vmem>>, %arg2: memref<16x32xf32, #tpu.memory_space<vmem>>, %arg3: memref<1x2x8x32xf32, #tpu.memory_space<vmem>>, %arg4: memref<1x2x8xf32, #tpu.memory_space<vmem>>, %arg5: memref<1x192x32xf32, #tpu.memory_space<vmem>>, %arg6: memref<1x8x32xf32, #tpu.memory_space<vmem>>, %arg7: memref<1x24x128xf32, #tpu.memory_space<vmem>>) attributes {dimension_semantics = [#tpu.dimension_semantics<parallel>], iteration_bounds = array<i64: 3>, scalar_prefetch = 0 : i64, scratch_operands = 0 : i64, tpu.core_type = #tpu.core_type<tc>, window_params = [{pipeline_mode = #tpu.pipeline_mode<synchronous>, transform_indices = @transform_0, window_bounds = array<i64: 4, 32>}, {pipeline_mode = #tpu.pipeline_mode<synchronous>, transform_indices = @transform_1, window_bounds = array<i64: 16, 32>}, {transform_indices = @transform_2, window_bounds = array<i64: 1, 2, 8, 32>}, {transform_indices = @transform_3, window_bounds = array<i64: 1, 2, 8>}, {transform_indices = @transform_4, window_bounds = array<i64: 1, 192, 32>}, {transform_indices = @transform_5, window_bounds = array<i64: 1, 8, 32>}, {transform_indices = @transform_6, window_bounds = array<i64: 1, 24, 128>}]} {
    %c0 = arith.constant 0 : index
    %c0_0 = arith.constant 0 : index
    %0 = vector.load %arg1[%c0, %c0_0] : memref<4x32xf32, #tpu.memory_space<vmem>>, vector<4x32xf32>
    %c0_1 = arith.constant 0 : index
    %c0_2 = arith.constant 0 : index
    %1 = vector.load %arg2[%c0_1, %c0_2] : memref<16x32xf32, #tpu.memory_space<vmem>>, vector<16x32xf32>
    %c0_3 = arith.constant 0 : index
    %c0_4 = arith.constant 0 : index
    %c0_5 = arith.constant 0 : index
    %c0_6 = arith.constant 0 : index
    %2 = vector.load %arg3[%c0_3, %c0_4, %c0_5, %c0_6] : memref<1x2x8x32xf32, #tpu.memory_space<vmem>>, vector<1x2x8x32xf32>
    %3 = vector.shape_cast %2 : vector<1x2x8x32xf32> to vector<2x8x32xf32>
    %c0_7 = arith.constant 0 : index
    %c0_8 = arith.constant 0 : index
    %c0_9 = arith.constant 0 : index
    %4 = vector.load %arg4[%c0_7, %c0_8, %c0_9] : memref<1x2x8xf32, #tpu.memory_space<vmem>>, vector<1x2x8xf32>
    %5 = vector.shape_cast %4 : vector<1x2x8xf32> to vector<2x8xf32>
    %c0_10 = arith.constant 0 : index
    %c0_11 = arith.constant 0 : index
    %c0_12 = arith.constant 0 : index
    %6 = vector.load %arg5[%c0_10, %c0_11, %c0_12] : memref<1x192x32xf32, #tpu.memory_space<vmem>>, vector<1x192x32xf32>
    %7 = vector.shape_cast %6 : vector<1x192x32xf32> to vector<192x32xf32>
    %c0_13 = arith.constant 0 : index
    %c0_14 = arith.constant 0 : index
    %c0_15 = arith.constant 0 : index
    %8 = vector.load %arg6[%c0_13, %c0_14, %c0_15] : memref<1x8x32xf32, #tpu.memory_space<vmem>>, vector<1x8x32xf32>
    %9 = vector.shape_cast %8 : vector<1x8x32xf32> to vector<8x32xf32>
    %10 = vector.extract_strided_slice %7 {offsets = [0, 0], sizes = [32, 32], strides = [1, 1]} : vector<192x32xf32> to vector<32x32xf32>
    %11 = vector.extract_strided_slice %7 {offsets = [32, 0], sizes = [32, 32], strides = [1, 1]} : vector<192x32xf32> to vector<32x32xf32>
    %12 = vector.extract_strided_slice %7 {offsets = [64, 0], sizes = [32, 32], strides = [1, 1]} : vector<192x32xf32> to vector<32x32xf32>
    %13 = vector.extract_strided_slice %7 {offsets = [96, 0], sizes = [32, 32], strides = [1, 1]} : vector<192x32xf32> to vector<32x32xf32>
    %14 = vector.extract_strided_slice %7 {offsets = [128, 0], sizes = [32, 32], strides = [1, 1]} : vector<192x32xf32> to vector<32x32xf32>
    %15 = vector.extract_strided_slice %7 {offsets = [160, 0], sizes = [32, 32], strides = [1, 1]} : vector<192x32xf32> to vector<32x32xf32>
    %16 = vector.extract_strided_slice %9 {offsets = [0, 0], sizes = [1, 32], strides = [1, 1]} : vector<8x32xf32> to vector<1x32xf32>
    %17 = vector.extract_strided_slice %9 {offsets = [1, 0], sizes = [1, 32], strides = [1, 1]} : vector<8x32xf32> to vector<1x32xf32>
    %18 = vector.extract_strided_slice %9 {offsets = [2, 0], sizes = [1, 32], strides = [1, 1]} : vector<8x32xf32> to vector<1x32xf32>
    %19 = vector.extract_strided_slice %9 {offsets = [3, 0], sizes = [1, 32], strides = [1, 1]} : vector<8x32xf32> to vector<1x32xf32>
    %20 = vector.extract_strided_slice %9 {offsets = [4, 0], sizes = [1, 32], strides = [1, 1]} : vector<8x32xf32> to vector<1x32xf32>
    %21 = vector.extract_strided_slice %9 {offsets = [5, 0], sizes = [1, 32], strides = [1, 1]} : vector<8x32xf32> to vector<1x32xf32>
    %cst = arith.constant dense<0.000000e+00> : vector<4x32xf32>
    %22 = tpu.matmul %0, %10, %cst {dimension_numbers = #tpu.dot_dimension_numbers<[1], [0], [0], [1], [0, 0, 1, 1], [], []>} : vector<4x32xf32>, vector<32x32xf32>, vector<4x32xf32> -> vector<4x32xf32>
    %23 = vector.broadcast %16 : vector<1x32xf32> to vector<4x32xf32>
    %24 = arith.addf %22, %23 : vector<4x32xf32>
    %cst_16 = arith.constant 0.000000e+00 : f32
    %25 = vector.broadcast %cst_16 : f32 to vector<4x32xf32>
    %26 = arith.maximumf %24, %25 : vector<4x32xf32>
    %cst_17 = arith.constant dense<0.000000e+00> : vector<4x32xf32>
    %27 = tpu.matmul %26, %11, %cst_17 {dimension_numbers = #tpu.dot_dimension_numbers<[1], [0], [0], [1], [0, 0, 1, 1], [], []>} : vector<4x32xf32>, vector<32x32xf32>, vector<4x32xf32> -> vector<4x32xf32>
    %28 = vector.broadcast %17 : vector<1x32xf32> to vector<4x32xf32>
    %29 = arith.addf %27, %28 : vector<4x32xf32>
    %cst_18 = arith.constant 0.000000e+00 : f32
    %30 = vector.broadcast %cst_18 : f32 to vector<4x32xf32>
    %31 = arith.maximumf %29, %30 : vector<4x32xf32>
    %32 = tpu.iota {dimensions = array<i32: 1>} : vector<1x32xi32>
    %c16_i32 = arith.constant 16 : i32
    %33 = vector.broadcast %c16_i32 : i32 to vector<1x32xi32>
    %34 = arith.cmpi slt, %32, %33 : vector<1x32xi32>
    %35 = arith.extui %34 : vector<1x32xi1> to vector<1x32xi32>
    %36 = arith.sitofp %35 : vector<1x32xi32> to vector<1x32xf32>
    %37 = vector.extract_strided_slice %31 {offsets = [0, 0], sizes = [2, 32], strides = [1, 1]} : vector<4x32xf32> to vector<2x32xf32>
    %38 = vector.broadcast %36 : vector<1x32xf32> to vector<2x32xf32>
    %39 = arith.mulf %37, %38 : vector<2x32xf32>
    %40 = vector.extract_strided_slice %31 {offsets = [2, 0], sizes = [2, 32], strides = [1, 1]} : vector<4x32xf32> to vector<2x32xf32>
    %cst_19 = arith.constant 0.000000e+00 : f32
    %41 = vector.broadcast %cst_19 : f32 to vector<2x8xf32>
    %42 = arith.cmpf ogt, %5, %41 : vector<2x8xf32>
    %cst_20 = arith.constant 0.000000e+00 : f32
    %cst_21 = arith.constant -1.000000e+06 : f32
    %43 = vector.broadcast %cst_20 : f32 to vector<2x8xf32>
    %44 = vector.broadcast %cst_21 : f32 to vector<2x8xf32>
    %45 = arith.select %42, %43, %44 : vector<2x8xi1>, vector<2x8xf32>
    %cst_22 = arith.constant dense<0.000000e+00> : vector<16x32xf32>
    %46 = tpu.matmul %1, %15, %cst_22 {dimension_numbers = #tpu.dot_dimension_numbers<[1], [0], [0], [1], [0, 0, 1, 1], [], []>} : vector<16x32xf32>, vector<32x32xf32>, vector<16x32xf32> -> vector<16x32xf32>
    %47 = vector.broadcast %21 : vector<1x32xf32> to vector<16x32xf32>
    %48 = arith.addf %46, %47 : vector<16x32xf32>
    %cst_23 = arith.constant 0.000000e+00 : f32
    %49 = vector.broadcast %cst_23 : f32 to vector<24x128xf32>
    %c0_24 = arith.constant 0 : index
    %c0_25 = arith.constant 0 : index
    %c0_26 = arith.constant 0 : index
    %50 = vector.load %arg7[%c0_24, %c0_25, %c0_26] : memref<1x24x128xf32, #tpu.memory_space<vmem>>, vector<1x24x128xf32>
    %51 = vector.shape_cast %50 : vector<1x24x128xf32> to vector<24x128xf32>
    %52 = vector.shape_cast %49 : vector<24x128xf32> to vector<1x24x128xf32>
    tpu.vector_store %arg7[%c0_24, %c0_25, %c0_26], %52 {strides = array<i32>} : memref<1x24x128xf32, #tpu.memory_space<vmem>>, vector<1x24x128xf32>,
    %53 = vector.extract_strided_slice %3 {offsets = [0, 0, 0], sizes = [1, 8, 32], strides = [1, 1, 1]} : vector<2x8x32xf32> to vector<1x8x32xf32>
    %54 = vector.shape_cast %53 : vector<1x8x32xf32> to vector<8x32xf32>
    %cst_27 = arith.constant dense<0.000000e+00> : vector<8x32xf32>
    %55 = tpu.matmul %54, %12, %cst_27 {dimension_numbers = #tpu.dot_dimension_numbers<[1], [0], [0], [1], [0, 0, 1, 1], [], []>} : vector<8x32xf32>, vector<32x32xf32>, vector<8x32xf32> -> vector<8x32xf32>
    %56 = vector.broadcast %18 : vector<1x32xf32> to vector<8x32xf32>
    %57 = arith.addf %55, %56 : vector<8x32xf32>
    %cst_28 = arith.constant 0.000000e+00 : f32
    %58 = vector.broadcast %cst_28 : f32 to vector<8x32xf32>
    %59 = arith.maximumf %57, %58 : vector<8x32xf32>
    %cst_29 = arith.constant dense<0.000000e+00> : vector<8x32xf32>
    %60 = tpu.matmul %59, %13, %cst_29 {dimension_numbers = #tpu.dot_dimension_numbers<[1], [0], [0], [1], [0, 0, 1, 1], [], []>} : vector<8x32xf32>, vector<32x32xf32>, vector<8x32xf32> -> vector<8x32xf32>
    %61 = vector.broadcast %19 : vector<1x32xf32> to vector<8x32xf32>
    %62 = arith.addf %60, %61 : vector<8x32xf32>
    %cst_30 = arith.constant 0.000000e+00 : f32
    %63 = vector.broadcast %cst_30 : f32 to vector<8x32xf32>
    %64 = arith.maximumf %62, %63 : vector<8x32xf32>
    %cst_31 = arith.constant dense<0.000000e+00> : vector<8x32xf32>
    %65 = tpu.matmul %64, %14, %cst_31 {dimension_numbers = #tpu.dot_dimension_numbers<[1], [0], [0], [1], [0, 0, 1, 1], [], []>} : vector<8x32xf32>, vector<32x32xf32>, vector<8x32xf32> -> vector<8x32xf32>
    %66 = vector.broadcast %20 : vector<1x32xf32> to vector<8x32xf32>
    %67 = arith.addf %65, %66 : vector<8x32xf32>
    %68 = vector.extract_strided_slice %45 {offsets = [0, 0], sizes = [1, 8], strides = [1, 1]} : vector<2x8xf32> to vector<1x8xf32>
    %69 = vector.extract_strided_slice %39 {offsets = [0, 0], sizes = [1, 32], strides = [1, 1]} : vector<2x32xf32> to vector<1x32xf32>
    %70 = tpu.transpose %64, [1, 0] : vector<8x32xf32> -> vector<32x8xf32>
    %cst_32 = arith.constant dense<0.000000e+00> : vector<1x8xf32>
    %71 = tpu.matmul %69, %70, %cst_32 {dimension_numbers = #tpu.dot_dimension_numbers<[1], [0], [0], [1], [0, 0, 1, 1], [], []>} : vector<1x32xf32>, vector<32x8xf32>, vector<1x8xf32> -> vector<1x8xf32>
    %72 = arith.addf %71, %68 : vector<1x8xf32>
    %73 = vector.extract_strided_slice %40 {offsets = [0, 0], sizes = [1, 32], strides = [1, 1]} : vector<2x32xf32> to vector<1x32xf32>
    %74 = tpu.transpose %67, [1, 0] : vector<8x32xf32> -> vector<32x8xf32>
    %cst_33 = arith.constant dense<0.000000e+00> : vector<1x8xf32>
    %75 = tpu.matmul %73, %74, %cst_33 {dimension_numbers = #tpu.dot_dimension_numbers<[1], [0], [0], [1], [0, 0, 1, 1], [], []>} : vector<1x32xf32>, vector<32x8xf32>, vector<1x8xf32> -> vector<1x8xf32>
    %76 = arith.addf %75, %68 : vector<1x8xf32>
    %cst_34 = arith.constant dense<0xFF800000> : vector<1xf32>
    %77 = vector.multi_reduction <maximumf>, %72, %cst_34 [1] : vector<1x8xf32> to vector<1xf32>
    %78 = vector.shape_cast %77 : vector<1xf32> to vector<1x1xf32>
    %79 = vector.broadcast %78 : vector<1x1xf32> to vector<1x8xf32>
    %80 = arith.subf %72, %79 : vector<1x8xf32>
    %81 = math.exp %80 : vector<1x8xf32>
    %cst_35 = arith.constant dense<0.000000e+00> : vector<1xf32>
    %82 = vector.multi_reduction <add>, %81, %cst_35 [1] : vector<1x8xf32> to vector<1xf32>
    %83 = vector.shape_cast %82 : vector<1xf32> to vector<1x1xf32>
    %84 = tpu.reciprocal %83 {approx = true} : vector<1x1xf32> -> vector<1x1xf32>
    %85 = vector.broadcast %84 : vector<1x1xf32> to vector<1x8xf32>
    %86 = arith.mulf %81, %85 : vector<1x8xf32>
    %cst_36 = arith.constant dense<0.000000e+00> : vector<1x32xf32>
    %87 = tpu.matmul %86, %54, %cst_36 {dimension_numbers = #tpu.dot_dimension_numbers<[1], [0], [0], [1], [0, 0, 1, 1], [], []>} : vector<1x8xf32>, vector<8x32xf32>, vector<1x32xf32> -> vector<1x32xf32>
    %88 = vector.extract_strided_slice %0 {offsets = [0, 0], sizes = [1, 32], strides = [1, 1]} : vector<4x32xf32> to vector<1x32xf32>
    %89 = arith.addf %87, %88 : vector<1x32xf32>
    %cst_37 = arith.constant dense<0.000000e+00> : vector<1x32xf32>
    %90 = tpu.matmul %89, %15, %cst_37 {dimension_numbers = #tpu.dot_dimension_numbers<[1], [0], [0], [1], [0, 0, 1, 1], [], []>} : vector<1x32xf32>, vector<32x32xf32>, vector<1x32xf32> -> vector<1x32xf32>
    %91 = arith.addf %90, %21 : vector<1x32xf32>
    %92 = vector.extract_strided_slice %91 {offsets = [0, 0], sizes = [1, 4], strides = [1, 1]} : vector<1x32xf32> to vector<1x4xf32>
    %cst_38 = arith.constant 0.000000e+00 : f32
    %93 = vector.broadcast %cst_38 : f32 to vector<1x116xf32>
    %94 = tpu.concatenate %92, %76, %93 in 1 : vector<1x4xf32>, vector<1x8xf32>, vector<1x116xf32> -> vector<1x128xf32>
    %c0_39 = arith.constant 0 : index
    %c0_40 = arith.constant 0 : index
    %c0_41 = arith.constant 0 : index
    %95 = vector.load %arg7[%c0_39, %c0_40, %c0_41] : memref<1x24x128xf32, #tpu.memory_space<vmem>>, vector<1x1x128xf32>
    %96 = vector.shape_cast %95 : vector<1x1x128xf32> to vector<1x128xf32>
    %97 = vector.shape_cast %94 : vector<1x128xf32> to vector<1x1x128xf32>
    tpu.vector_store %arg7[%c0_39, %c0_40, %c0_41], %97 {strides = array<i32>} : memref<1x24x128xf32, #tpu.memory_space<vmem>>, vector<1x1x128xf32>,
    %98 = vector.extract_strided_slice %3 {offsets = [1, 0, 0], sizes = [1, 8, 32], strides = [1, 1, 1]} : vector<2x8x32xf32> to vector<1x8x32xf32>
    %99 = vector.shape_cast %98 : vector<1x8x32xf32> to vector<8x32xf32>
    %cst_42 = arith.constant dense<0.000000e+00> : vector<8x32xf32>
    %100 = tpu.matmul %99, %12, %cst_42 {dimension_numbers = #tpu.dot_dimension_numbers<[1], [0], [0], [1], [0, 0, 1, 1], [], []>} : vector<8x32xf32>, vector<32x32xf32>, vector<8x32xf32> -> vector<8x32xf32>
    %101 = vector.broadcast %18 : vector<1x32xf32> to vector<8x32xf32>
    %102 = arith.addf %100, %101 : vector<8x32xf32>
    %cst_43 = arith.constant 0.000000e+00 : f32
    %103 = vector.broadcast %cst_43 : f32 to vector<8x32xf32>
    %104 = arith.maximumf %102, %103 : vector<8x32xf32>
    %cst_44 = arith.constant dense<0.000000e+00> : vector<8x32xf32>
    %105 = tpu.matmul %104, %13, %cst_44 {dimension_numbers = #tpu.dot_dimension_numbers<[1], [0], [0], [1], [0, 0, 1, 1], [], []>} : vector<8x32xf32>, vector<32x32xf32>, vector<8x32xf32> -> vector<8x32xf32>
    %106 = vector.broadcast %19 : vector<1x32xf32> to vector<8x32xf32>
    %107 = arith.addf %105, %106 : vector<8x32xf32>
    %cst_45 = arith.constant 0.000000e+00 : f32
    %108 = vector.broadcast %cst_45 : f32 to vector<8x32xf32>
    %109 = arith.maximumf %107, %108 : vector<8x32xf32>
    %cst_46 = arith.constant dense<0.000000e+00> : vector<8x32xf32>
    %110 = tpu.matmul %109, %14, %cst_46 {dimension_numbers = #tpu.dot_dimension_numbers<[1], [0], [0], [1], [0, 0, 1, 1], [], []>} : vector<8x32xf32>, vector<32x32xf32>, vector<8x32xf32> -> vector<8x32xf32>
    %111 = vector.broadcast %20 : vector<1x32xf32> to vector<8x32xf32>
    %112 = arith.addf %110, %111 : vector<8x32xf32>
    %113 = vector.extract_strided_slice %45 {offsets = [1, 0], sizes = [1, 8], strides = [1, 1]} : vector<2x8xf32> to vector<1x8xf32>
    %114 = vector.extract_strided_slice %39 {offsets = [1, 0], sizes = [1, 32], strides = [1, 1]} : vector<2x32xf32> to vector<1x32xf32>
    %115 = tpu.transpose %109, [1, 0] : vector<8x32xf32> -> vector<32x8xf32>
    %cst_47 = arith.constant dense<0.000000e+00> : vector<1x8xf32>
    %116 = tpu.matmul %114, %115, %cst_47 {dimension_numbers = #tpu.dot_dimension_numbers<[1], [0], [0], [1], [0, 0, 1, 1], [], []>} : vector<1x32xf32>, vector<32x8xf32>, vector<1x8xf32> -> vector<1x8xf32>
    %117 = arith.addf %116, %113 : vector<1x8xf32>
    %118 = vector.extract_strided_slice %40 {offsets = [1, 0], sizes = [1, 32], strides = [1, 1]} : vector<2x32xf32> to vector<1x32xf32>
    %119 = tpu.transpose %112, [1, 0] : vector<8x32xf32> -> vector<32x8xf32>
    %cst_48 = arith.constant dense<0.000000e+00> : vector<1x8xf32>
    %120 = tpu.matmul %118, %119, %cst_48 {dimension_numbers = #tpu.dot_dimension_numbers<[1], [0], [0], [1], [0, 0, 1, 1], [], []>} : vector<1x32xf32>, vector<32x8xf32>, vector<1x8xf32> -> vector<1x8xf32>
    %121 = arith.addf %120, %113 : vector<1x8xf32>
    %cst_49 = arith.constant dense<0xFF800000> : vector<1xf32>
    %122 = vector.multi_reduction <maximumf>, %117, %cst_49 [1] : vector<1x8xf32> to vector<1xf32>
    %123 = vector.shape_cast %122 : vector<1xf32> to vector<1x1xf32>
    %124 = vector.broadcast %123 : vector<1x1xf32> to vector<1x8xf32>
    %125 = arith.subf %117, %124 : vector<1x8xf32>
    %126 = math.exp %125 : vector<1x8xf32>
    %cst_50 = arith.constant dense<0.000000e+00> : vector<1xf32>
    %127 = vector.multi_reduction <add>, %126, %cst_50 [1] : vector<1x8xf32> to vector<1xf32>
    %128 = vector.shape_cast %127 : vector<1xf32> to vector<1x1xf32>
    %129 = tpu.reciprocal %128 {approx = true} : vector<1x1xf32> -> vector<1x1xf32>
    %130 = vector.broadcast %129 : vector<1x1xf32> to vector<1x8xf32>
    %131 = arith.mulf %126, %130 : vector<1x8xf32>
    %cst_51 = arith.constant dense<0.000000e+00> : vector<1x32xf32>
    %132 = tpu.matmul %131, %99, %cst_51 {dimension_numbers = #tpu.dot_dimension_numbers<[1], [0], [0], [1], [0, 0, 1, 1], [], []>} : vector<1x8xf32>, vector<8x32xf32>, vector<1x32xf32> -> vector<1x32xf32>
    %133 = vector.extract_strided_slice %0 {offsets = [1, 0], sizes = [1, 32], strides = [1, 1]} : vector<4x32xf32> to vector<1x32xf32>
    %134 = arith.addf %132, %133 : vector<1x32xf32>
    %cst_52 = arith.constant dense<0.000000e+00> : vector<1x32xf32>
    %135 = tpu.matmul %134, %15, %cst_52 {dimension_numbers = #tpu.dot_dimension_numbers<[1], [0], [0], [1], [0, 0, 1, 1], [], []>} : vector<1x32xf32>, vector<32x32xf32>, vector<1x32xf32> -> vector<1x32xf32>
    %136 = arith.addf %135, %21 : vector<1x32xf32>
    %137 = vector.extract_strided_slice %136 {offsets = [0, 0], sizes = [1, 4], strides = [1, 1]} : vector<1x32xf32> to vector<1x4xf32>
    %cst_53 = arith.constant 0.000000e+00 : f32
    %138 = vector.broadcast %cst_53 : f32 to vector<1x116xf32>
    %139 = tpu.concatenate %137, %121, %138 in 1 : vector<1x4xf32>, vector<1x8xf32>, vector<1x116xf32> -> vector<1x128xf32>
    %c0_54 = arith.constant 0 : index
    %c1 = arith.constant 1 : index
    %c0_55 = arith.constant 0 : index
    %140 = vector.load %arg7[%c0_54, %c1, %c0_55] : memref<1x24x128xf32, #tpu.memory_space<vmem>>, vector<1x1x128xf32>
    %141 = vector.shape_cast %140 : vector<1x1x128xf32> to vector<1x128xf32>
    %142 = vector.shape_cast %139 : vector<1x128xf32> to vector<1x1x128xf32>
    tpu.vector_store %arg7[%c0_54, %c1, %c0_55], %142 {strides = array<i32>} : memref<1x24x128xf32, #tpu.memory_space<vmem>>, vector<1x1x128xf32>,
    %143 = vector.extract_strided_slice %48 {offsets = [0, 4], sizes = [16, 8], strides = [1, 1]} : vector<16x32xf32> to vector<16x8xf32>
    %cst_56 = arith.constant 0.000000e+00 : f32
    %144 = vector.broadcast %cst_56 : f32 to vector<16x120xf32>
    %145 = tpu.concatenate %143, %144 in 1 : vector<16x8xf32>, vector<16x120xf32> -> vector<16x128xf32>
    %c0_57 = arith.constant 0 : index
    %c8 = arith.constant 8 : index
    %c0_58 = arith.constant 0 : index
    %146 = vector.load %arg7[%c0_57, %c8, %c0_58] : memref<1x24x128xf32, #tpu.memory_space<vmem>>, vector<1x16x128xf32>
    %147 = vector.shape_cast %146 : vector<1x16x128xf32> to vector<16x128xf32>
    %148 = vector.shape_cast %145 : vector<16x128xf32> to vector<1x16x128xf32>
    tpu.vector_store %arg7[%c0_57, %c8, %c0_58], %148 {strides = array<i32>} : memref<1x24x128xf32, #tpu.memory_space<vmem>>, vector<1x16x128xf32>,
    return
  }
  func.func @transform_0(%arg0: i32) -> (i32, i32) {
    %c0_i32 = arith.constant 0 : i32
    %c0_i32_0 = arith.constant 0 : i32
    %c0_i32_1 = arith.constant 0 : i32
    return %c0_i32, %c0_i32_0 : i32, i32
  }
  func.func @transform_1(%arg0: i32) -> (i32, i32) {
    %c0_i32 = arith.constant 0 : i32
    %c0_i32_0 = arith.constant 0 : i32
    %c0_i32_1 = arith.constant 0 : i32
    return %c0_i32, %c0_i32_0 : i32, i32
  }
  func.func @transform_2(%arg0: i32) -> (i32, i32, i32, i32) {
    %c0_i32 = arith.constant 0 : i32
    %c0_i32_0 = arith.constant 0 : i32
    %c0_i32_1 = arith.constant 0 : i32
    %c0_i32_2 = arith.constant 0 : i32
    return %arg0, %c0_i32, %c0_i32_0, %c0_i32_1 : i32, i32, i32, i32
  }
  func.func @transform_3(%arg0: i32) -> (i32, i32, i32) {
    %c0_i32 = arith.constant 0 : i32
    %c0_i32_0 = arith.constant 0 : i32
    %c0_i32_1 = arith.constant 0 : i32
    return %arg0, %c0_i32, %c0_i32_0 : i32, i32, i32
  }
  func.func @transform_4(%arg0: i32) -> (i32, i32, i32) {
    %c0_i32 = arith.constant 0 : i32
    %c0_i32_0 = arith.constant 0 : i32
    %c0_i32_1 = arith.constant 0 : i32
    return %arg0, %c0_i32, %c0_i32_0 : i32, i32, i32
  }
  func.func @transform_5(%arg0: i32) -> (i32, i32, i32) {
    %c0_i32 = arith.constant 0 : i32
    %c0_i32_0 = arith.constant 0 : i32
    %c0_i32_1 = arith.constant 0 : i32
    return %arg0, %c0_i32, %c0_i32_0 : i32, i32, i32
  }
  func.func @transform_6(%arg0: i32) -> (i32, i32, i32) {
    %c0_i32 = arith.constant 0 : i32
    %c0_i32_0 = arith.constant 0 : i32
    %c0_i32_1 = arith.constant 0 : i32
    return %arg0, %c0_i32, %c0_i32_0 : i32, i32, i32
  }
}

</mosaic_0001>

<llo_original>
// kernel: history_selection_forward.1
$region0: #{history_selection_forward.1}
  #allocation0 [shape = 'u32[]', space=smem, size = 0x4, offset = 0x4, fixed_abs, tag = 'smem constant byte address 0x4 - core index']
  #allocation1 [shape = 'u32[144,128]{1,0:T(1,128)}', space=vmem, size = 0x12000, scoped, tag = 'internal scratch']
  %s0 = inlined_call_operand.vmem [shape: f32[4,32], index: 0, kind: input, shape index: {}]
  %s1 = inlined_call_operand.vmem [shape: f32[16,32], index: 1, kind: input, shape index: {}]
  %s2 = inlined_call_operand.vmem [shape: f32[3,2,8,32], index: 2, kind: input, shape index: {}]
  %s3 = inlined_call_operand.vmem [shape: f32[3,2,8], index: 3, kind: input, shape index: {}]
  %s4 = inlined_call_operand.vmem [shape: f32[3,192,32], index: 4, kind: input, shape index: {}]
  %s5 = inlined_call_operand.vmem [shape: f32[3,8,32], index: 5, kind: input, shape index: {}]
  %s6 = inlined_call_operand.vmem [shape: f32[3,24,128], index: 6, kind: output, shape index: {}]
  %s7 = sld [smem:[#allocation0]]
  $region57: #{history_selection_forward.1} parent=0
    _
  %s9 = ssub.s32 1, %s7
  %s10 = scalar_select 0, %s9, %s7
  loop: start=0, step=1, limit=5
  $region2: #{history_selection_forward.1} parent=0 // loop_pre_header
    _
  $region3: #{history_selection_forward.1} parent=0 // loop_header
    %s12 = sphi 0, %s16
    %p13 = scmp.ge.s32.totalorder %s12, 5
    %s20 = sphi 0, %s20
    %s22 = sphi 0, %s20
    %s23 = sphi 0, %s22
    %s37 = sphi 0, %s23
    %s41 = sphi 0, %s41
    %s43 = sphi 0, %s41
    %s44 = sphi 0, %s43
    %s58 = sphi 0, %s44
    %s64 = sphi 0, %s66
    %s67 = sphi 0, %s64
    %s68 = sphi 0, %s67
    %s84 = sphi 0, %s68
    %s90 = sphi 0, %s92
    %s93 = sphi 0, %s90
    %s94 = sphi 0, %s93
    %s110 = sphi 0, %s94
    %s116 = sphi 0, %s118
    %s119 = sphi 0, %s116
    %s120 = sphi 0, %s119
    %s136 = sphi 0, %s120
    %s142 = sphi 0, %s144
    %s145 = sphi 0, %s142
    %s146 = sphi 0, %s145
    %s162 = sphi 0, %s146
    %s168 = sphi 0, %s170
    %s171 = sphi 0, %s168
    %s172 = sphi 0, %s171
    %s188 = sphi 0, %s172
  $region4: #{history_selection_forward.1} parent=0 // loop_header_branch
    %15 = sbr.rel (%p13) target = $region8
  $region5: #{history_selection_forward.1} parent=0 // loop_body
    %s17 = ssub.s32 %s12, 1
    %s18 = ssub.s32 %s12, 2
    %s19 = sadd.s32 %s12, 1
    %s21 = sadd.s32 %s20, 1
    %p24 = scmp.eq.s32.totalorder %s12, 2
    %p25 = scmp.ne.s32.totalorder %s20, %s22
    %p26 = scmp.eq.s32.totalorder %s12, 0
    %p27 = por %p25, %p26
    %p28 = scmp.ne.s32.totalorder %s20, %s22
    %p29 = scmp.eq.s32.totalorder %s17, 2
    %p30 = por %p28, %p29
    %p31 = scmp.ne.s32.totalorder %s22, %s23
    %p32 = scmp.eq.s32.totalorder %s17, 0
    %p33 = por %p31, %p32
    %p34 = scmp.ne.s32.totalorder %s22, %s23
    %p35 = scmp.eq.s32.totalorder %s18, 2
    %p36 = por %p34, %p35
    %p38 = scmp.ne.s32.totalorder %s23, %s37
    %p39 = scmp.eq.s32.totalorder %s18, 0
    %p40 = por %p38, %p39
    %s42 = sadd.s32 %s41, 1
    %p45 = scmp.eq.s32.totalorder %s12, 2
    %p46 = scmp.ne.s32.totalorder %s41, %s43
    %p47 = scmp.eq.s32.totalorder %s12, 0
    %p48 = por %p46, %p47
    %p49 = scmp.ne.s32.totalorder %s41, %s43
    %p50 = scmp.eq.s32.totalorder %s17, 2
    %p51 = por %p49, %p50
    %p52 = scmp.ne.s32.totalorder %s43, %s44
    %p53 = scmp.eq.s32.totalorder %s17, 0
    %p54 = por %p52, %p53
    %p55 = scmp.ne.s32.totalorder %s43, %s44
    %p56 = scmp.eq.s32.totalorder %s18, 2
    %p57 = por %p55, %p56
    %p59 = scmp.ne.s32.totalorder %s44, %s58
    %p60 = scmp.eq.s32.totalorder %s18, 0
    %p61 = por %p59, %p60
    %s62 = ssub.s32 %s12, %s19
    %p63 = scmp.eq.s32.totalorder %s62, 0
    %s65 = sadd.s32 %s64, 1
    %s66 = scalar_select %p63, %s64, %s65
    %p69 = pneg %p63
    %p70 = scmp.eq.s32.totalorder %s12, 2
    %p71 = por %p69, %p70
    %p72 = scmp.ne.s32.totalorder %s64, %s67
    %p73 = scmp.eq.s32.totalorder %s12, 0
    %p74 = por %p72, %p73
    %p75 = scmp.ne.s32.totalorder %s64, %s67
    %p76 = scmp.eq.s32.totalorder %s17, 2
    %p77 = por %p75, %p76
    %p78 = scmp.ne.s32.totalorder %s67, %s68
    %p79 = scmp.eq.s32.totalorder %s17, 0
    %p80 = por %p78, %p79
    %p81 = scmp.ne.s32.totalorder %s67, %s68
    %p82 = scmp.eq.s32.totalorder %s18, 2
    %p83 = por %p81, %p82
    %p85 = scmp.ne.s32.totalorder %s68, %s84
    %p86 = scmp.eq.s32.totalorder %s18, 0
    %p87 = por %p85, %p86
    %s88 = ssub.s32 %s12, %s19
    %p89 = scmp.eq.s32.totalorder %s88, 0
    %s91 = sadd.s32 %s90, 1
    %s92 = scalar_select %p89, %s90, %s91
    %p95 = pneg %p89
    %p96 = scmp.eq.s32.totalorder %s12, 2
    %p97 = por %p95, %p96
    %p98 = scmp.ne.s32.totalorder %s90, %s93
    %p99 = scmp.eq.s32.totalorder %s12, 0
    %p100 = por %p98, %p99
    %p101 = scmp.ne.s32.totalorder %s90, %s93
    %p102 = scmp.eq.s32.totalorder %s17, 2
    %p103 = por %p101, %p102
    %p104 = scmp.ne.s32.totalorder %s93, %s94
    %p105 = scmp.eq.s32.totalorder %s17, 0
    %p106 = por %p104, %p105
    %p107 = scmp.ne.s32.totalorder %s93, %s94
    %p108 = scmp.eq.s32.totalorder %s18, 2
    %p109 = por %p107, %p108
    %p111 = scmp.ne.s32.totalorder %s94, %s110
    %p112 = scmp.eq.s32.totalorder %s18, 0
    %p113 = por %p111, %p112
    %s114 = ssub.s32 %s12, %s19
    %p115 = scmp.eq.s32.totalorder %s114, 0
    %s117 = sadd.s32 %s116, 1
    %s118 = scalar_select %p115, %s116, %s117
    %p121 = pneg %p115
    %p122 = scmp.eq.s32.totalorder %s12, 2
    %p123 = por %p121, %p122
    %p124 = scmp.ne.s32.totalorder %s116, %s119
    %p125 = scmp.eq.s32.totalorder %s12, 0
    %p126 = por %p124, %p125
    %p127 = scmp.ne.s32.totalorder %s116, %s119
    %p128 = scmp.eq.s32.totalorder %s17, 2
    %p129 = por %p127, %p128
    %p130 = scmp.ne.s32.totalorder %s119, %s120
    %p131 = scmp.eq.s32.totalorder %s17, 0
    %p132 = por %p130, %p131
    %p133 = scmp.ne.s32.totalorder %s119, %s120
    %p134 = scmp.eq.s32.totalorder %s18, 2
    %p135 = por %p133, %p134
    %p137 = scmp.ne.s32.totalorder %s120, %s136
    %p138 = scmp.eq.s32.totalorder %s18, 0
    %p139 = por %p137, %p138
    %s140 = ssub.s32 %s12, %s19
    %p141 = scmp.eq.s32.totalorder %s140, 0
    %s143 = sadd.s32 %s142, 1
    %s144 = scalar_select %p141, %s142, %s143
    %p147 = pneg %p141
    %p148 = scmp.eq.s32.totalorder %s12, 2
    %p149 = por %p147, %p148
    %p150 = scmp.ne.s32.totalorder %s142, %s145
    %p151 = scmp.eq.s32.totalorder %s12, 0
    %p152 = por %p150, %p151
    %p153 = scmp.ne.s32.totalorder %s142, %s145
    %p154 = scmp.eq.s32.totalorder %s17, 2
    %p155 = por %p153, %p154
    %p156 = scmp.ne.s32.totalorder %s145, %s146
    %p157 = scmp.eq.s32.totalorder %s17, 0
    %p158 = por %p156, %p157
    %p159 = scmp.ne.s32.totalorder %s145, %s146
    %p160 = scmp.eq.s32.totalorder %s18, 2
    %p161 = por %p159, %p160
    %p163 = scmp.ne.s32.totalorder %s146, %s162
    %p164 = scmp.eq.s32.totalorder %s18, 0
    %p165 = por %p163, %p164
    %s166 = ssub.s32 %s12, %s19
    %p167 = scmp.eq.s32.totalorder %s166, 0
    %s169 = sadd.s32 %s168, 1
    %s170 = scalar_select %p167, %s168, %s169
    %p173 = pneg %p167
    %p174 = scmp.eq.s32.totalorder %s12, 2
    %p175 = por %p173, %p174
    %p176 = scmp.ne.s32.totalorder %s168, %s171
    %p177 = scmp.eq.s32.totalorder %s12, 0
    %p178 = por %p176, %p177
    %p179 = scmp.ne.s32.totalorder %s168, %s171
    %p180 = scmp.eq.s32.totalorder %s17, 2
    %p181 = por %p179, %p180
    %p182 = scmp.ne.s32.totalorder %s171, %s172
    %p183 = scmp.eq.s32.totalorder %s17, 0
    %p184 = por %p182, %p183
    %p185 = scmp.ne.s32.totalorder %s171, %s172
    %p186 = scmp.eq.s32.totalorder %s18, 2
    %p187 = por %p185, %p186
    %p189 = scmp.ne.s32.totalorder %s172, %s188
    %p190 = scmp.eq.s32.totalorder %s18, 0
    %p191 = por %p189, %p190
    %p192 = scmp.le.s32.totalorder 1, %s12
    %p193 = scmp.lt.s32.totalorder %s12, 4
    %p194 = pnand %p192, %p193
    %p195 = pneg %p194
    // Predicated region
    $region9: #{history_selection_forward.1} parent=5 // pred_check
      _
    $region10: #{history_selection_forward.1} parent=5 // pred_check_branch
      %197 = sbr.rel (%p194) target = $region12
    $region11: #{history_selection_forward.1} parent=5 // pred_region
      %s198 = ssub.s32 %s12, 1
      // Predicated region
      $region13: #{history_selection_forward.1} parent=11 // pred_check
        %p199 = pneg %p33
      $region14: #{history_selection_forward.1} parent=11 // pred_check_branch
        %201 = sbr.rel (%p199) target = $region16
      $region15: #{history_selection_forward.1} parent=11 // pred_region
        _
      $region16: #{history_selection_forward.1} parent=11 // pred_fallthru
        _
      // Predicated region
      $region17: #{history_selection_forward.1} parent=11 // pred_check
        %p202 = pneg %p54
      $region18: #{history_selection_forward.1} parent=11 // pred_check_branch
        %204 = sbr.rel (%p202) target = $region20
      $region19: #{history_selection_forward.1} parent=11 // pred_region
        _
      $region20: #{history_selection_forward.1} parent=11 // pred_fallthru
        _
    $region12: #{history_selection_forward.1} parent=5 // pred_fallthru
      _
    %p205 = scmp.lt.s32.totalorder %s12, 3
    // Predicated region
    $region21: #{history_selection_forward.1} parent=5 // pred_check
      %p206 = pneg %p205
    $region22: #{history_selection_forward.1} parent=5 // pred_check_branch
      %208 = sbr.rel (%p206) target = $region24
    $region23: #{history_selection_forward.1} parent=5 // pred_region
      // Predicated region
      $region25: #{history_selection_forward.1} parent=23 // pred_check
        %p209 = pneg %p74
      $region26: #{history_selection_forward.1} parent=23 // pred_check_branch
        %211 = sbr.rel (%p209) target = $region28
      $region27: #{history_selection_forward.1} parent=23 // pred_region
        %p212 = scmp.lt.s32.totalorder %s12, 2
        %s213 = scalar_select %p212, %s12, 2
        %s214 = smul.addr %s213, 2
        %s215 = smul.addr %s214, 8
        %s216 = scalar_lea.vmem %s2, %s215
      $region28: #{history_selection_forward.1} parent=23 // pred_fallthru
        _
      // Predicated region
      $region29: #{history_selection_forward.1} parent=23 // pred_check
        %p217 = pneg %p100
      $region30: #{history_selection_forward.1} parent=23 // pred_check_branch
        %219 = sbr.rel (%p217) target = $region32
      $region31: #{history_selection_forward.1} parent=23 // pred_region
        %p220 = scmp.lt.s32.totalorder %s12, 2
        %s221 = scalar_select %p220, %s12, 2
        %s222 = smul.addr %s221, 2
        %s223 = scalar_lea.vmem %s3, %s222
      $region32: #{history_selection_forward.1} parent=23 // pred_fallthru
        _
      // Predicated region
      $region33: #{history_selection_forward.1} parent=23 // pred_check
        %p224 = pneg %p126
      $region34: #{history_selection_forward.1} parent=23 // pred_check_branch
        %226 = sbr.rel (%p224) target = $region36
      $region35: #{history_selection_forward.1} parent=23 // pred_region
        %p227 = scmp.lt.s32.totalorder %s12, 2
        %s228 = scalar_select %p227, %s12, 2
        %s229 = smul.addr %s228, 24
        %s230 = smul.addr %s229, 8
        %s231 = scalar_lea.vmem %s4, %s230
      $region36: #{history_selection_forward.1} parent=23 // pred_fallthru
        _
      // Predicated region
      $region37: #{history_selection_forward.1} parent=23 // pred_check
        %p232 = pneg %p152
      $region38: #{history_selection_forward.1} parent=23 // pred_check_branch
        %234 = sbr.rel (%p232) target = $region40
      $region39: #{history_selection_forward.1} parent=23 // pred_region
        %p235 = scmp.lt.s32.totalorder %s12, 2
        %s236 = scalar_select %p235, %s12, 2
        %s237 = smul.addr %s236, 8
        %s238 = scalar_lea.vmem %s5, %s237
      $region40: #{history_selection_forward.1} parent=23 // pred_fallthru
        _
    $region24: #{history_selection_forward.1} parent=5 // pred_fallthru
      _
    %p239 = scmp.le.s32.totalorder 1, %s12
    %p240 = scmp.lt.s32.totalorder %s12, 4
    %p241 = pnand %p239, %p240
    %p242 = pneg %p241
    // Predicated region
    $region41: #{history_selection_forward.1} parent=5 // pred_check
      _
    $region42: #{history_selection_forward.1} parent=5 // pred_check_branch
      %244 = sbr.rel (%p241) target = $region44
    $region43: #{history_selection_forward.1} parent=5 // pred_region
      %s245 = ssub.s32 %s12, 1
      %p246 = pneg %p33
      %p247 = pneg %p30
      %p248 = pneg %p54
      %p249 = pneg %p51
      %p250 = scmp.lt.s32.totalorder %s17, 2
      %s251 = scalar_select %p250, %s17, 2
      %s252 = smul.addr %s251, 2
      %s253 = smul.addr %s252, 8
      %s254 = scalar_lea.vmem %s2, %s253
      %p255 = pneg %p80
      %p256 = pneg %p77
      %p257 = scmp.lt.s32.totalorder %s17, 2
      %s258 = scalar_select %p257, %s17, 2
      %s259 = smul.addr %s258, 2
      %s260 = scalar_lea.vmem %s3, %s259
      %p261 = pneg %p106
      %p262 = pneg %p103
      %p263 = scmp.lt.s32.totalorder %s17, 2
      %s264 = scalar_select %p263, %s17, 2
      %s265 = smul.addr %s264, 24
      %s266 = smul.addr %s265, 8
      %s267 = scalar_lea.vmem %s4, %s266
      %p268 = pneg %p132
      %p269 = pneg %p129
      %p270 = scmp.lt.s32.totalorder %s17, 2
      %s271 = scalar_select %p270, %s17, 2
      %s272 = smul.addr %s271, 8
      %s273 = scalar_lea.vmem %s5, %s272
      %p274 = pneg %p158
      %p275 = pneg %p155
      %p276 = pneg %p184
      %p277 = pneg %p181
      %p278 = scmp.lt.s32.totalorder %s17, 2
      %s279 = scalar_select %p278, %s17, 2
      %s280 = smul.addr %s279, 3
      %s281 = smul.addr %s280, 8
      %s282 = scalar_lea.vmem %s6, %s281
      %p283 = scmp.lt.s32.totalorder %s17, 2
      %s284 = scalar_select %p283, %s17, 2
      %s285 = smul.addr %s284, 2
      %s286 = smul.addr %s285, 8
      %s287 = scalar_lea.vmem %s2, %s286
      %p288 = scmp.lt.s32.totalorder %s17, 2
      %s289 = scalar_select %p288, %s17, 2
      %s290 = smul.addr %s289, 2
      %s291 = scalar_lea.vmem %s3, %s290
      %p292 = scmp.lt.s32.totalorder %s17, 2
      %s293 = scalar_select %p292, %s17, 2
      %s294 = smul.addr %s293, 24
      %s295 = smul.addr %s294, 8
      %s296 = scalar_lea.vmem %s4, %s295
      %p297 = scmp.lt.s32.totalorder %s17, 2
      %s298 = scalar_select %p297, %s17, 2
      %s299 = smul.addr %s298, 8
      %s300 = scalar_lea.vmem %s5, %s299
      %p301 = scmp.lt.s32.totalorder %s17, 2
      %s302 = scalar_select %p301, %s17, 2
      %s303 = smul.addr %s302, 3
      %s304 = smul.addr %s303, 8
      %s305 = scalar_lea.vmem %s6, %s304
      %v306 = vld [vmem:[%s0] sm:$0xf]
      %v307 = vld [vmem:[%s1] sm:$0xff]
      %v308 = vld [vmem:[%s1 + $0x8] sm:$0xff]
      %v309 = vld [vmem:[%s287] sm:$0xff]
      %v310 = vld [vmem:[%s287 + $0x8] sm:$0xff]
      %v311 = vld [vmem:[%s291] sm:$0x3]
      %v312 = vld [vmem:[%s296] sm:$0xff]
      %v313 = vld [vmem:[%s296 + $0x8] sm:$0xff]
      %v314 = vld [vmem:[%s296 + $0x10] sm:$0xff]
      %v315 = vld [vmem:[%s296 + $0x18] sm:$0xff]
      %v316 = vld [vmem:[%s296 + $0x20] sm:$0xff]
      %v317 = vld [vmem:[%s296 + $0x28] sm:$0xff]
      %v318 = vld [vmem:[%s296 + $0x30] sm:$0xff]
      %v319 = vld [vmem:[%s296 + $0x38] sm:$0xff]
      %v320 = vld [vmem:[%s296 + $0x40] sm:$0xff]
      %v321 = vld [vmem:[%s296 + $0x48] sm:$0xff]
      %v322 = vld [vmem:[%s296 + $0x50] sm:$0xff]
      %v323 = vld [vmem:[%s296 + $0x58] sm:$0xff]
      %v324 = vld [vmem:[%s296 + $0x60] sm:$0xff]
      %v325 = vld [vmem:[%s296 + $0x68] sm:$0xff]
      %v326 = vld [vmem:[%s296 + $0x70] sm:$0xff]
      %v327 = vld [vmem:[%s296 + $0x78] sm:$0xff]
      %v328 = vld [vmem:[%s296 + $0x80] sm:$0xff]
      %v329 = vld [vmem:[%s296 + $0x88] sm:$0xff]
      %v330 = vld [vmem:[%s296 + $0x90] sm:$0xff]
      %v331 = vld [vmem:[%s296 + $0x98] sm:$0xff]
      %v332 = vld [vmem:[%s296 + $0xa0] sm:$0xff]
      %v333 = vld [vmem:[%s296 + $0xa8] sm:$0xff]
      %v334 = vld [vmem:[%s296 + $0xb0] sm:$0xff]
      %v335 = vld [vmem:[%s296 + $0xb8] sm:$0xff]
      %v336 = vld [vmem:[%s300] sm:$0xff]
      %v337 = vlaneseq
      %v338 = vshrl.u32 %v337, 7
      %v339 = vsub.s32 0, %v338
      %v340 = vrot.slane %v336, %v339
      %vm341 = vcmask 261120
      %v343 = vsel %vm341, %v306, 0
      %345 = vmatprep.subr.mxu0 0.0
      %346 = vmatpush1.msra.mxu0 %v312
      %347 = vmatprep.subr.mxu0 0.0
      %348 = vmatpush1.msra.mxu0 %v313
      %349 = vmatprep.subr.mxu0 0.0
      %350 = vmatpush1.msra.mxu0 %v314
      %351 = vmatprep.subr.mxu0 0.0
      %352 = vmatpush1.msra.mxu0 %v315
      %353 = vmatprep.subr.mxu0 0.0
      %354 = vmatpush1.msra.mxu0 0.0
      %355 = vmatprep.subr.mxu0 0.0
      %356 = vmatpush1.msra.mxu0 0.0
      %357 = vmatprep.subr.mxu0 0.0
      %358 = vmatpush1.msra.mxu0 0.0
      %359 = vmatprep.subr.mxu0 0.0
      %360 = vmatpush1.msra.mxu0 0.0
      %361 = vmatprep.subr.mxu0 0.0
      %362 = vmatpush1.msra.mxu0 0.0
      %363 = vmatprep.subr.mxu0 0.0
      %364 = vmatpush1.msra.mxu0 0.0
      %365 = vmatprep.subr.mxu0 0.0
      %366 = vmatpush1.msra.mxu0 0.0
      %367 = vmatprep.subr.mxu0 0.0
      %368 = vmatpush1.msra.mxu0 0.0
      %369 = vmatprep.subr.mxu0 0.0
      %370 = vmatpush1.msra.mxu0 0.0
      %371 = vmatprep.subr.mxu0 0.0
      %372 = vmatpush1.msra.mxu0 0.0
      %373 = vmatprep.subr.mxu0 0.0
      %374 = vmatpush1.msra.mxu0 0.0
      %375 = vmatprep.subr.mxu0 0.0
      %376 = vmatpush1.msra.mxu0 0.0
      %377 = vmatprep.subr.mxu0 0.0
      %378 = vmatpush1.msra.mxu0 0.0
      %379 = vmatprep.subr.mxu0 0.0
      %380 = vmatpush1.msra.mxu0 0.0
      %381 = vmatprep.subr.mxu0 0.0
      %382 = vmatpush1.msra.mxu0 0.0
      %383 = vmatprep.subr.mxu0 0.0
      %384 = vmatpush1.msra.mxu0 0.0
      %385 = vmatprep.subr.mxu0 0.0
      %386 = vmatpush1.msra.mxu0 0.0
      %387 = vmatprep.subr.mxu0 0.0
      %388 = vmatpush1.msra.mxu0 0.0
      %389 = vmatprep.subr.mxu0 0.0
      %390 = vmatpush1.msra.mxu0 0.0
      %391 = vmatprep.subr.mxu0 0.0
      %392 = vmatpush1.msra.mxu0 0.0
      %393 = vmatprep.subr.mxu0 0.0
      %394 = vmatpush1.msra.mxu0 0.0
      %395 = vmatprep.subr.mxu0 0.0
      %396 = vmatpush1.msra.mxu0 0.0
      %397 = vmatprep.subr.mxu0 0.0
      %398 = vmatpush1.msra.mxu0 0.0
      %399 = vmatprep.subr.mxu0 0.0
      %400 = vmatpush1.msra.mxu0 0.0
      %401 = vmatprep.subr.mxu0 0.0
      %402 = vmatpush1.msra.mxu0 0.0
      %403 = vmatprep.subr.mxu0 0.0
      %404 = vmatpush1.msra.mxu0 0.0
      %405 = vmatprep.subr.mxu0 0.0
      %406 = vmatpush1.msra.mxu0 0.0
      %407 = vmatprep.subr.mxu0 0.0
      %408 = vmatpush1.msra.mxu0 0.0
      %409 = vmatprep.mubr.f32.mxu0 0.0
      %410 = vmatmul.mubr.f32.gmra.mrb[0].mxu0 %v343
      %v411 = vpop.f32.mrb[0].mxu0
      %v412 = vadd.f32 %v340, %v411
      %v413 = vpop.f32.mrb[0].mxu0
      %414 = vdwg.mxu0
      %v415 = vmax.f32 %v412, 0.0
      %v416 = vlaneseq
      %v417 = vshrl.u32 %v416, 7
      %v418 = vsub.s32 1, %v417
      %v419 = vrot.slane %v336, %v418
      %v421 = vsel %vm341, %v415, 0
      %423 = vmatprep.subr.mxu0 0.0
      %424 = vmatpush1.msra.mxu0 %v316
      %425 = vmatprep.subr.mxu0 0.0
      %426 = vmatpush1.msra.mxu0 %v317
      %427 = vmatprep.subr.mxu0 0.0
      %428 = vmatpush1.msra.mxu0 %v318
      %429 = vmatprep.subr.mxu0 0.0
      %430 = vmatpush1.msra.mxu0 %v319
      %431 = vmatprep.subr.mxu0 0.0
      %432 = vmatpush1.msra.mxu0 0.0
      %433 = vmatprep.subr.mxu0 0.0
      %434 = vmatpush1.msra.mxu0 0.0
      %435 = vmatprep.subr.mxu0 0.0
      %436 = vmatpush1.msra.mxu0 0.0
      %437 = vmatprep.subr.mxu0 0.0
      %438 = vmatpush1.msra.mxu0 0.0
      %439 = vmatprep.subr.mxu0 0.0
      %440 = vmatpush1.msra.mxu0 0.0
      %441 = vmatprep.subr.mxu0 0.0
      %442 = vmatpush1.msra.mxu0 0.0
      %443 = vmatprep.subr.mxu0 0.0
      %444 = vmatpush1.msra.mxu0 0.0
      %445 = vmatprep.subr.mxu0 0.0
      %446 = vmatpush1.msra.mxu0 0.0
      %447 = vmatprep.subr.mxu0 0.0
      %448 = vmatpush1.msra.mxu0 0.0
      %449 = vmatprep.subr.mxu0 0.0
      %450 = vmatpush1.msra.mxu0 0.0
      %451 = vmatprep.subr.mxu0 0.0
      %452 = vmatpush1.msra.mxu0 0.0
      %453 = vmatprep.subr.mxu0 0.0
      %454 = vmatpush1.msra.mxu0 0.0
      %455 = vmatprep.subr.mxu0 0.0
      %456 = vmatpush1.msra.mxu0 0.0
      %457 = vmatprep.subr.mxu0 0.0
      %458 = vmatpush1.msra.mxu0 0.0
      %459 = vmatprep.subr.mxu0 0.0
      %460 = vmatpush1.msra.mxu0 0.0
      %461 = vmatprep.subr.mxu0 0.0
      %462 = vmatpush1.msra.mxu0 0.0
      %463 = vmatprep.subr.mxu0 0.0
      %464 = vmatpush1.msra.mxu0 0.0
      %465 = vmatprep.subr.mxu0 0.0
      %466 = vmatpush1.msra.mxu0 0.0
      %467 = vmatprep.subr.mxu0 0.0
      %468 = vmatpush1.msra.mxu0 0.0
      %469 = vmatprep.subr.mxu0 0.0
      %470 = vmatpush1.msra.mxu0 0.0
      %471 = vmatprep.subr.mxu0 0.0
      %472 = vmatpush1.msra.mxu0 0.0
      %473 = vmatprep.subr.mxu0 0.0
      %474 = vmatpush1.msra.mxu0 0.0
      %475 = vmatprep.subr.mxu0 0.0
      %476 = vmatpush1.msra.mxu0 0.0
      %477 = vmatprep.subr.mxu0 0.0
      %478 = vmatpush1.msra.mxu0 0.0
      %479 = vmatprep.subr.mxu0 0.0
      %480 = vmatpush1.msra.mxu0 0.0
      %481 = vmatprep.subr.mxu0 0.0
      %482 = vmatpush1.msra.mxu0 0.0
      %483 = vmatprep.subr.mxu0 0.0
      %484 = vmatpush1.msra.mxu0 0.0
      %485 = vmatprep.subr.mxu0 0.0
      %486 = vmatpush1.msra.mxu0 0.0
      %487 = vmatprep.mubr.f32.mxu0 0.0
      %488 = vmatmul.mubr.f32.gmra.mrb[0].mxu0 %v421
      %v489 = vpop.f32.mrb[0].mxu0
      %v490 = vadd.f32 %v419, %v489
      %v491 = vpop.f32.mrb[0].mxu0
      %492 = vdwg.mxu0
      %v493 = vmax.f32 %v490, 0.0
      %v494 = vlaneseq
      %v495 = vand.u32 %v494, 127
      %vm496 = vcmp.lt.s32.totalorder %v495, 16
      %v497 = vsel %vm496, 1, 0
      %v498 = vcvt.s32.f32 %v497
      %v499 = vmul.f32 %v493, %v498
      %vm500 = vcmp.gt.f32.partialorder %v311, 0.0
      %v501 = vsel %vm500, 0.0, -1000000.0
      %v502 = vlaneseq
      %v503 = vshrl.u32 %v502, 7
      %v504 = vsub.s32 5, %v503
      %v505 = vrot.slane %v336, %v504
      %v507 = vsel %vm341, %v307, 0
      %v510 = vsel %vm341, %v308, 0
      %512 = vmatprep.subr.mxu0 0.0
      %513 = vmatpush1.msra.mxu0 %v332
      %514 = vmatprep.subr.mxu0 0.0
      %515 = vmatpush1.msra.mxu0 %v333
      %516 = vmatprep.subr.mxu0 0.0
      %517 = vmatpush1.msra.mxu0 %v334
      %518 = vmatprep.subr.mxu0 0.0
      %519 = vmatpush1.msra.mxu0 %v335
      %520 = vmatprep.subr.mxu0 0.0
      %521 = vmatpush1.msra.mxu0 0.0
      %522 = vmatprep.subr.mxu0 0.0
      %523 = vmatpush1.msra.mxu0 0.0
      %524 = vmatprep.subr.mxu0 0.0
      %525 = vmatpush1.msra.mxu0 0.0
      %526 = vmatprep.subr.mxu0 0.0
      %527 = vmatpush1.msra.mxu0 0.0
      %528 = vmatprep.subr.mxu0 0.0
      %529 = vmatpush1.msra.mxu0 0.0
      %530 = vmatprep.subr.mxu0 0.0
      %531 = vmatpush1.msra.mxu0 0.0
      %532 = vmatprep.subr.mxu0 0.0
      %533 = vmatpush1.msra.mxu0 0.0
      %534 = vmatprep.subr.mxu0 0.0
      %535 = vmatpush1.msra.mxu0 0.0
      %536 = vmatprep.subr.mxu0 0.0
      %537 = vmatpush1.msra.mxu0 0.0
      %538 = vmatprep.subr.mxu0 0.0
      %539 = vmatpush1.msra.mxu0 0.0
      %540 = vmatprep.subr.mxu0 0.0
      %541 = vmatpush1.msra.mxu0 0.0
      %542 = vmatprep.subr.mxu0 0.0
      %543 = vmatpush1.msra.mxu0 0.0
      %544 = vmatprep.subr.mxu0 0.0
      %545 = vmatpush1.msra.mxu0 0.0
      %546 = vmatprep.subr.mxu0 0.0
      %547 = vmatpush1.msra.mxu0 0.0
      %548 = vmatprep.subr.mxu0 0.0
      %549 = vmatpush1.msra.mxu0 0.0
      %550 = vmatprep.subr.mxu0 0.0
      %551 = vmatpush1.msra.mxu0 0.0
      %552 = vmatprep.subr.mxu0 0.0
      %553 = vmatpush1.msra.mxu0 0.0
      %554 = vmatprep.subr.mxu0 0.0
      %555 = vmatpush1.msra.mxu0 0.0
      %556 = vmatprep.subr.mxu0 0.0
      %557 = vmatpush1.msra.mxu0 0.0
      %558 = vmatprep.subr.mxu0 0.0
      %559 = vmatpush1.msra.mxu0 0.0
      %560 = vmatprep.subr.mxu0 0.0
      %561 = vmatpush1.msra.mxu0 0.0
      %562 = vmatprep.subr.mxu0 0.0
      %563 = vmatpush1.msra.mxu0 0.0
      %564 = vmatprep.subr.mxu0 0.0
      %565 = vmatpush1.msra.mxu0 0.0
      %566 = vmatprep.subr.mxu0 0.0
      %567 = vmatpush1.msra.mxu0 0.0
      %568 = vmatprep.subr.mxu0 0.0
      %569 = vmatpush1.msra.mxu0 0.0
      %570 = vmatprep.subr.mxu0 0.0
      %571 = vmatpush1.msra.mxu0 0.0
      %572 = vmatprep.subr.mxu0 0.0
      %573 = vmatpush1.msra.mxu0 0.0
      %574 = vmatprep.subr.mxu0 0.0
      %575 = vmatpush1.msra.mxu0 0.0
      %576 = vmatprep.mubr.f32.mxu0 0.0
      %577 = vmatmul.mubr.f32.gmra.mrb[0].mxu0 %v507
      %v578 = vpop.f32.mrb[0].mxu0
      %v579 = vadd.f32 %v505, %v578
      %v580 = vpop.f32.mrb[0].mxu0
      %581 = vmatprep.mubr.f32.mxu0 0.0
      %582 = vmatmul.mubr.f32.gmra.mrb[0].mxu0 %v510
      %v583 = vpop.f32.mrb[0].mxu0
      %v584 = vadd.f32 %v505, %v583
      %v585 = vpop.f32.mrb[0].mxu0
      %586 = vdwg.mxu0
      %587 = vst [vmem:[%s305] sm:$0xff] 0.0
      %588 = vst [vmem:[%s305 + $0x8] sm:$0xff] 0.0
      %589 = vst [vmem:[%s305 + $0x10] sm:$0xff] 0.0
      %v590 = vlaneseq
      %v591 = vshrl.u32 %v590, 7
      %v592 = vsub.s32 2, %v591
      %v593 = vrot.slane %v336, %v592
      %v595 = vsel %vm341, %v309, 0
      %597 = vmatprep.subr.mxu0 0.0
      %598 = vmatpush1.msra.mxu0 %v320
      %599 = vmatprep.subr.mxu0 0.0
      %600 = vmatpush1.msra.mxu0 %v321
      %601 = vmatprep.subr.mxu0 0.0
      %602 = vmatpush1.msra.mxu0 %v322
      %603 = vmatprep.subr.mxu0 0.0
      %604 = vmatpush1.msra.mxu0 %v323
      %605 = vmatprep.subr.mxu0 0.0
      %606 = vmatpush1.msra.mxu0 0.0
      %607 = vmatprep.subr.mxu0 0.0
      %608 = vmatpush1.msra.mxu0 0.0
      %609 = vmatprep.subr.mxu0 0.0
      %610 = vmatpush1.msra.mxu0 0.0
      %611 = vmatprep.subr.mxu0 0.0
      %612 = vmatpush1.msra.mxu0 0.0
      %613 = vmatprep.subr.mxu0 0.0
      %614 = vmatpush1.msra.mxu0 0.0
      %615 = vmatprep.subr.mxu0 0.0
      %616 = vmatpush1.msra.mxu0 0.0
      %617 = vmatprep.subr.mxu0 0.0
      %618 = vmatpush1.msra.mxu0 0.0
      %619 = vmatprep.subr.mxu0 0.0
      %620 = vmatpush1.msra.mxu0 0.0
      %621 = vmatprep.subr.mxu0 0.0
      %622 = vmatpush1.msra.mxu0 0.0
      %623 = vmatprep.subr.mxu0 0.0
      %624 = vmatpush1.msra.mxu0 0.0
      %625 = vmatprep.subr.mxu0 0.0
      %626 = vmatpush1.msra.mxu0 0.0
      %627 = vmatprep.subr.mxu0 0.0
      %628 = vmatpush1.msra.mxu0 0.0
      %629 = vmatprep.subr.mxu0 0.0
      %630 = vmatpush1.msra.mxu0 0.0
      %631 = vmatprep.subr.mxu0 0.0
      %632 = vmatpush1.msra.mxu0 0.0
      %633 = vmatprep.subr.mxu0 0.0
      %634 = vmatpush1.msra.mxu0 0.0
      %635 = vmatprep.subr.mxu0 0.0
      %636 = vmatpush1.msra.mxu0 0.0
      %637 = vmatprep.subr.mxu0 0.0
      %638 = vmatpush1.msra.mxu0 0.0
      %639 = vmatprep.subr.mxu0 0.0
      %640 = vmatpush1.msra.mxu0 0.0
      %641 = vmatprep.subr.mxu0 0.0
      %642 = vmatpush1.msra.mxu0 0.0
      %643 = vmatprep.subr.mxu0 0.0
      %644 = vmatpush1.msra.mxu0 0.0
      %645 = vmatprep.subr.mxu0 0.0
      %646 = vmatpush1.msra.mxu0 0.0
      %647 = vmatprep.subr.mxu0 0.0
      %648 = vmatpush1.msra.mxu0 0.0
      %649 = vmatprep.subr.mxu0 0.0
      %650 = vmatpush1.msra.mxu0 0.0
      %651 = vmatprep.subr.mxu0 0.0
      %652 = vmatpush1.msra.mxu0 0.0
      %653 = vmatprep.subr.mxu0 0.0
      %654 = vmatpush1.msra.mxu0 0.0
      %655 = vmatprep.subr.mxu0 0.0
      %656 = vmatpush1.msra.mxu0 0.0
      %657 = vmatprep.subr.mxu0 0.0
      %658 = vmatpush1.msra.mxu0 0.0
      %659 = vmatprep.subr.mxu0 0.0
      %660 = vmatpush1.msra.mxu0 0.0
      %661 = vmatprep.mubr.f32.mxu0 0.0
      %662 = vmatmul.mubr.f32.gmra.mrb[0].mxu0 %v595
      %v663 = vpop.f32.mrb[0].mxu0
      %v664 = vadd.f32 %v593, %v663
      %v665 = vpop.f32.mrb[0].mxu0
      %666 = vdwg.mxu0
      %v667 = vmax.f32 %v664, 0.0
      %v668 = vlaneseq
      %v669 = vshrl.u32 %v668, 7
      %v670 = vsub.s32 3, %v669
      %v671 = vrot.slane %v336, %v670
      %v673 = vsel %vm341, %v667, 0
      %675 = vmatprep.subr.mxu0 0.0
      %676 = vmatpush1.msra.mxu0 %v324
      %677 = vmatprep.subr.mxu0 0.0
      %678 = vmatpush1.msra.mxu0 %v325
      %679 = vmatprep.subr.mxu0 0.0
      %680 = vmatpush1.msra.mxu0 %v326
      %681 = vmatprep.subr.mxu0 0.0
      %682 = vmatpush1.msra.mxu0 %v327
      %683 = vmatprep.subr.mxu0 0.0
      %684 = vmatpush1.msra.mxu0 0.0
      %685 = vmatprep.subr.mxu0 0.0
      %686 = vmatpush1.msra.mxu0 0.0
      %687 = vmatprep.subr.mxu0 0.0
      %688 = vmatpush1.msra.mxu0 0.0
      %689 = vmatprep.subr.mxu0 0.0
      %690 = vmatpush1.msra.mxu0 0.0
      %691 = vmatprep.subr.mxu0 0.0
      %692 = vmatpush1.msra.mxu0 0.0
      %693 = vmatprep.subr.mxu0 0.0
      %694 = vmatpush1.msra.mxu0 0.0
      %695 = vmatprep.subr.mxu0 0.0
      %696 = vmatpush1.msra.mxu0 0.0
      %697 = vmatprep.subr.mxu0 0.0
      %698 = vmatpush1.msra.mxu0 0.0
      %699 = vmatprep.subr.mxu0 0.0
      %700 = vmatpush1.msra.mxu0 0.0
      %701 = vmatprep.subr.mxu0 0.0
      %702 = vmatpush1.msra.mxu0 0.0
      %703 = vmatprep.subr.mxu0 0.0
      %704 = vmatpush1.msra.mxu0 0.0
      %705 = vmatprep.subr.mxu0 0.0
      %706 = vmatpush1.msra.mxu0 0.0
      %707 = vmatprep.subr.mxu0 0.0
      %708 = vmatpush1.msra.mxu0 0.0
      %709 = vmatprep.subr.mxu0 0.0
      %710 = vmatpush1.msra.mxu0 0.0
      %711 = vmatprep.subr.mxu0 0.0
      %712 = vmatpush1.msra.mxu0 0.0
      %713 = vmatprep.subr.mxu0 0.0
      %714 = vmatpush1.msra.mxu0 0.0
      %715 = vmatprep.subr.mxu0 0.0
      %716 = vmatpush1.msra.mxu0 0.0
      %717 = vmatprep.subr.mxu0 0.0
      %718 = vmatpush1.msra.mxu0 0.0
      %719 = vmatprep.subr.mxu0 0.0
      %720 = vmatpush1.msra.mxu0 0.0
      %721 = vmatprep.subr.mxu0 0.0
      %722 = vmatpush1.msra.mxu0 0.0
      %723 = vmatprep.subr.mxu0 0.0
      %724 = vmatpush1.msra.mxu0 0.0
      %725 = vmatprep.subr.mxu0 0.0
      %726 = vmatpush1.msra.mxu0 0.0
      %727 = vmatprep.subr.mxu0 0.0
      %728 = vmatpush1.msra.mxu0 0.0
      %729 = vmatprep.subr.mxu0 0.0
      %730 = vmatpush1.msra.mxu0 0.0
      %731 = vmatprep.subr.mxu0 0.0
      %732 = vmatpush1.msra.mxu0 0.0
      %733 = vmatprep.subr.mxu0 0.0
      %734 = vmatpush1.msra.mxu0 0.0
      %735 = vmatprep.subr.mxu0 0.0
      %736 = vmatpush1.msra.mxu0 0.0
      %737 = vmatprep.subr.mxu0 0.0
      %738 = vmatpush1.msra.mxu0 0.0
      %739 = vmatprep.mubr.f32.mxu0 0.0
      %740 = vmatmul.mubr.f32.gmra.mrb[0].mxu0 %v673
      %v741 = vpop.f32.mrb[0].mxu0
      %v742 = vadd.f32 %v671, %v741
      %v743 = vpop.f32.mrb[0].mxu0
      %744 = vdwg.mxu0
      %v745 = vmax.f32 %v742, 0.0
      %v746 = vlaneseq
      %v747 = vshrl.u32 %v746, 7
      %v748 = vsub.s32 4, %v747
      %v749 = vrot.slane %v336, %v748
      %v751 = vsel %vm341, %v745, 0
      %753 = vmatprep.subr.mxu0 0.0
      %754 = vmatpush1.msra.mxu0 %v328
      %755 = vmatprep.subr.mxu0 0.0
      %756 = vmatpush1.msra.mxu0 %v329
      %757 = vmatprep.subr.mxu0 0.0
      %758 = vmatpush1.msra.mxu0 %v330
      %759 = vmatprep.subr.mxu0 0.0
      %760 = vmatpush1.msra.mxu0 %v331
      %761 = vmatprep.subr.mxu0 0.0
      %762 = vmatpush1.msra.mxu0 0.0
      %763 = vmatprep.subr.mxu0 0.0
      %764 = vmatpush1.msra.mxu0 0.0
      %765 = vmatprep.subr.mxu0 0.0
      %766 = vmatpush1.msra.mxu0 0.0
      %767 = vmatprep.subr.mxu0 0.0
      %768 = vmatpush1.msra.mxu0 0.0
      %769 = vmatprep.subr.mxu0 0.0
      %770 = vmatpush1.msra.mxu0 0.0
      %771 = vmatprep.subr.mxu0 0.0
      %772 = vmatpush1.msra.mxu0 0.0
      %773 = vmatprep.subr.mxu0 0.0
      %774 = vmatpush1.msra.mxu0 0.0
      %775 = vmatprep.subr.mxu0 0.0
      %776 = vmatpush1.msra.mxu0 0.0
      %777 = vmatprep.subr.mxu0 0.0
      %778 = vmatpush1.msra.mxu0 0.0
      %779 = vmatprep.subr.mxu0 0.0
      %780 = vmatpush1.msra.mxu0 0.0
      %781 = vmatprep.subr.mxu0 0.0
      %782 = vmatpush1.msra.mxu0 0.0
      %783 = vmatprep.subr.mxu0 0.0
      %784 = vmatpush1.msra.mxu0 0.0
      %785 = vmatprep.subr.mxu0 0.0
      %786 = vmatpush1.msra.mxu0 0.0
      %787 = vmatprep.subr.mxu0 0.0
      %788 = vmatpush1.msra.mxu0 0.0
      %789 = vmatprep.subr.mxu0 0.0
      %790 = vmatpush1.msra.mxu0 0.0
      %791 = vmatprep.subr.mxu0 0.0
      %792 = vmatpush1.msra.mxu0 0.0
      %793 = vmatprep.subr.mxu0 0.0
      %794 = vmatpush1.msra.mxu0 0.0
      %795 = vmatprep.subr.mxu0 0.0
      %796 = vmatpush1.msra.mxu0 0.0
      %797 = vmatprep.subr.mxu0 0.0
      %798 = vmatpush1.msra.mxu0 0.0
      %799 = vmatprep.subr.mxu0 0.0
      %800 = vmatpush1.msra.mxu0 0.0
      %801 = vmatprep.subr.mxu0 0.0
      %802 = vmatpush1.msra.mxu0 0.0
      %803 = vmatprep.subr.mxu0 0.0
      %804 = vmatpush1.msra.mxu0 0.0
      %805 = vmatprep.subr.mxu0 0.0
      %806 = vmatpush1.msra.mxu0 0.0
      %807 = vmatprep.subr.mxu0 0.0
      %808 = vmatpush1.msra.mxu0 0.0
      %809 = vmatprep.subr.mxu0 0.0
      %810 = vmatpush1.msra.mxu0 0.0
      %811 = vmatprep.subr.mxu0 0.0
      %812 = vmatpush1.msra.mxu0 0.0
      %813 = vmatprep.subr.mxu0 0.0
      %814 = vmatpush1.msra.mxu0 0.0
      %815 = vmatprep.subr.mxu0 0.0
      %816 = vmatpush1.msra.mxu0 0.0
      %817 = vmatprep.mubr.f32.mxu0 0.0
      %818 = vmatmul.mubr.f32.gmra.mrb[0].mxu0 %v751
      %v819 = vpop.f32.mrb[0].mxu0
      %v820 = vadd.f32 %v749, %v819
      %v821 = vpop.f32.mrb[0].mxu0
      %822 = vdwg.mxu0
      %v824 = vsel %vm341, %v499, 0
      %826 = vmatprep.subr.mxu0 0.0
      %827 = vmatpush1.xpose.msra.mxu0 %v751
      %828 = vmatprep.subr.mxu0 0.0
      %829 = vmatpush1.xpose.msra.mxu0 0.0
      %830 = vmatprep.subr.mxu0 0.0
      %831 = vmatpush1.xpose.msra.mxu0 0.0
      %832 = vmatprep.subr.mxu0 0.0
      %833 = vmatpush1.xpose.msra.mxu0 0.0
      %834 = vmatprep.subr.mxu0 0.0
      %835 = vmatpush1.xpose.msra.mxu0 0.0
      %836 = vmatprep.subr.mxu0 0.0
      %837 = vmatpush1.xpose.msra.mxu0 0.0
      %838 = vmatprep.subr.mxu0 0.0
      %839 = vmatpush1.xpose.msra.mxu0 0.0
      %840 = vmatprep.subr.mxu0 0.0
      %841 = vmatpush1.xpose.msra.mxu0 0.0
      %842 = vmatprep.subr.mxu0 0.0
      %843 = vmatpush1.xpose.msra.mxu0 0.0
      %844 = vmatprep.subr.mxu0 0.0
      %845 = vmatpush1.xpose.msra.mxu0 0.0
      %846 = vmatprep.subr.mxu0 0.0
      %847 = vmatpush1.xpose.msra.mxu0 0.0
      %848 = vmatprep.subr.mxu0 0.0
      %849 = vmatpush1.xpose.msra.mxu0 0.0
      %850 = vmatprep.subr.mxu0 0.0
      %851 = vmatpush1.xpose.msra.mxu0 0.0
      %852 = vmatprep.subr.mxu0 0.0
      %853 = vmatpush1.xpose.msra.mxu0 0.0
      %854 = vmatprep.subr.mxu0 0.0
      %855 = vmatpush1.xpose.msra.mxu0 0.0
      %856 = vmatprep.subr.mxu0 0.0
      %857 = vmatpush1.xpose.msra.mxu0 0.0
      %858 = vmatprep.subr.mxu0 0.0
      %859 = vmatpush1.xpose.msra.mxu0 0.0
      %860 = vmatprep.subr.mxu0 0.0
      %861 = vmatpush1.xpose.msra.mxu0 0.0
      %862 = vmatprep.subr.mxu0 0.0
      %863 = vmatpush1.xpose.msra.mxu0 0.0
      %864 = vmatprep.subr.mxu0 0.0
      %865 = vmatpush1.xpose.msra.mxu0 0.0
      %866 = vmatprep.subr.mxu0 0.0
      %867 = vmatpush1.xpose.msra.mxu0 0.0
      %868 = vmatprep.subr.mxu0 0.0
      %869 = vmatpush1.xpose.msra.mxu0 0.0
      %870 = vmatprep.subr.mxu0 0.0
      %871 = vmatpush1.xpose.msra.mxu0 0.0
      %872 = vmatprep.subr.mxu0 0.0
      %873 = vmatpush1.xpose.msra.mxu0 0.0
      %874 = vmatprep.subr.mxu0 0.0
      %875 = vmatpush1.xpose.msra.mxu0 0.0
      %876 = vmatprep.subr.mxu0 0.0
      %877 = vmatpush1.xpose.msra.mxu0 0.0
      %878 = vmatprep.subr.mxu0 0.0
      %879 = vmatpush1.xpose.msra.mxu0 0.0
      %880 = vmatprep.subr.mxu0 0.0
      %881 = vmatpush1.xpose.msra.mxu0 0.0
      %882 = vmatprep.subr.mxu0 0.0
      %883 = vmatpush1.xpose.msra.mxu0 0.0
      %884 = vmatprep.subr.mxu0 0.0
      %885 = vmatpush1.xpose.msra.mxu0 0.0
      %886 = vmatprep.subr.mxu0 0.0
      %887 = vmatpush1.xpose.msra.mxu0 0.0
      %888 = vmatprep.subr.mxu0 0.0
      %889 = vmatpush1.xpose.msra.mxu0 0.0
      %890 = vmatprep.mubr.f32.mxu0 0.0
      %891 = vmatmul.mubr.f32.gmra.mrb[0].mxu0 %v824
      %v892 = vpop.f32.mrb[0].mxu0
      %v893 = vadd.f32 %v501, %v892
      %v894 = vpop.f32.mrb[0].mxu0
      %895 = vdwg.mxu0
      %v897 = vrot.slane %v493, 2
      %v898 = vsel %vm341, %v897, 0
      %v901 = vsel %vm341, %v820, 0
      %903 = vmatprep.subr.mxu0 0.0
      %904 = vmatpush1.xpose.msra.mxu0 %v901
      %905 = vmatprep.subr.mxu0 0.0
      %906 = vmatpush1.xpose.msra.mxu0 0.0
      %907 = vmatprep.subr.mxu0 0.0
      %908 = vmatpush1.xpose.msra.mxu0 0.0
      %909 = vmatprep.subr.mxu0 0.0
      %910 = vmatpush1.xpose.msra.mxu0 0.0
      %911 = vmatprep.subr.mxu0 0.0
      %912 = vmatpush1.xpose.msra.mxu0 0.0
      %913 = vmatprep.subr.mxu0 0.0
      %914 = vmatpush1.xpose.msra.mxu0 0.0
      %915 = vmatprep.subr.mxu0 0.0
      %916 = vmatpush1.xpose.msra.mxu0 0.0
      %917 = vmatprep.subr.mxu0 0.0
      %918 = vmatpush1.xpose.msra.mxu0 0.0
      %919 = vmatprep.subr.mxu0 0.0
      %920 = vmatpush1.xpose.msra.mxu0 0.0
      %921 = vmatprep.subr.mxu0 0.0
      %922 = vmatpush1.xpose.msra.mxu0 0.0
      %923 = vmatprep.subr.mxu0 0.0
      %924 = vmatpush1.xpose.msra.mxu0 0.0
      %925 = vmatprep.subr.mxu0 0.0
      %926 = vmatpush1.xpose.msra.mxu0 0.0
      %927 = vmatprep.subr.mxu0 0.0
      %928 = vmatpush1.xpose.msra.mxu0 0.0
      %929 = vmatprep.subr.mxu0 0.0
      %930 = vmatpush1.xpose.msra.mxu0 0.0
      %931 = vmatprep.subr.mxu0 0.0
      %932 = vmatpush1.xpose.msra.mxu0 0.0
      %933 = vmatprep.subr.mxu0 0.0
      %934 = vmatpush1.xpose.msra.mxu0 0.0
      %935 = vmatprep.subr.mxu0 0.0
      %936 = vmatpush1.xpose.msra.mxu0 0.0
      %937 = vmatprep.subr.mxu0 0.0
      %938 = vmatpush1.xpose.msra.mxu0 0.0
      %939 = vmatprep.subr.mxu0 0.0
      %940 = vmatpush1.xpose.msra.mxu0 0.0
      %941 = vmatprep.subr.mxu0 0.0
      %942 = vmatpush1.xpose.msra.mxu0 0.0
      %943 = vmatprep.subr.mxu0 0.0
      %944 = vmatpush1.xpose.msra.mxu0 0.0
      %945 = vmatprep.subr.mxu0 0.0
      %946 = vmatpush1.xpose.msra.mxu0 0.0
      %947 = vmatprep.subr.mxu0 0.0
      %948 = vmatpush1.xpose.msra.mxu0 0.0
      %949 = vmatprep.subr.mxu0 0.0
      %950 = vmatpush1.xpose.msra.mxu0 0.0
      %951 = vmatprep.subr.mxu0 0.0
      %952 = vmatpush1.xpose.msra.mxu0 0.0
      %953 = vmatprep.subr.mxu0 0.0
      %954 = vmatpush1.xpose.msra.mxu0 0.0
      %955 = vmatprep.subr.mxu0 0.0
      %956 = vmatpush1.xpose.msra.mxu0 0.0
      %957 = vmatprep.subr.mxu0 0.0
      %958 = vmatpush1.xpose.msra.mxu0 0.0
      %959 = vmatprep.subr.mxu0 0.0
      %960 = vmatpush1.xpose.msra.mxu0 0.0
      %961 = vmatprep.subr.mxu0 0.0
      %962 = vmatpush1.xpose.msra.mxu0 0.0
      %963 = vmatprep.subr.mxu0 0.0
      %964 = vmatpush1.xpose.msra.mxu0 0.0
      %965 = vmatprep.subr.mxu0 0.0
      %966 = vmatpush1.xpose.msra.mxu0 0.0
      %967 = vmatprep.mubr.f32.mxu0 0.0
      %968 = vmatmul.mubr.f32.gmra.mrb[0].mxu0 %v898
      %v969 = vpop.f32.mrb[0].mxu0
      %v970 = vadd.f32 %v501, %v969
      %v971 = vpop.f32.mrb[0].mxu0
      %972 = vdwg.mxu0
      %vm973 = vcmask 57344
      %v974 = vsel %vm973, %v893, -inf
      %975 = vmax.xlane.f32.xlu0 %v974
      %v976 = vpop.xlane.xlu0 %975
      %v977 = vsub.f32 %v893, %v976
      %v978 = vmul.f32 %v977, 1.442695
      %v979 = vpow.pop %v978
      %v980 = vsel %vm973, %v979, 0.0
      %981 = vadd.xlane.f32.xlu0 %v980
      %v982 = vpop.xlane.xlu0 %981
      %v983 = vrcp.pop %v982
      %v984 = vmul.f32 %v979, %v983
      %vm985 = vcmask 64512
      %v987 = vsel %vm985, %v984, 0
      %989 = vmatprep.subr.mxu0 0.0
      %990 = vmatpush1.msra.mxu0 %v309
      %991 = vmatprep.subr.mxu0 0.0
      %992 = vmatpush1.msra.mxu0 0.0
      %993 = vmatprep.subr.mxu0 0.0
      %994 = vmatpush1.msra.mxu0 0.0
      %995 = vmatprep.subr.mxu0 0.0
      %996 = vmatpush1.msra.mxu0 0.0
      %997 = vmatprep.subr.mxu0 0.0
      %998 = vmatpush1.msra.mxu0 0.0
      %999 = vmatprep.subr.mxu0 0.0
      %1000 = vmatpush1.msra.mxu0 0.0
      %1001 = vmatprep.subr.mxu0 0.0
      %1002 = vmatpush1.msra.mxu0 0.0
      %1003 = vmatprep.subr.mxu0 0.0
      %1004 = vmatpush1.msra.mxu0 0.0
      %1005 = vmatprep.subr.mxu0 0.0
      %1006 = vmatpush1.msra.mxu0 0.0
      %1007 = vmatprep.subr.mxu0 0.0
      %1008 = vmatpush1.msra.mxu0 0.0
      %1009 = vmatprep.subr.mxu0 0.0
      %1010 = vmatpush1.msra.mxu0 0.0
      %1011 = vmatprep.subr.mxu0 0.0
      %1012 = vmatpush1.msra.mxu0 0.0
      %1013 = vmatprep.subr.mxu0 0.0
      %1014 = vmatpush1.msra.mxu0 0.0
      %1015 = vmatprep.subr.mxu0 0.0
      %1016 = vmatpush1.msra.mxu0 0.0
      %1017 = vmatprep.subr.mxu0 0.0
      %1018 = vmatpush1.msra.mxu0 0.0
      %1019 = vmatprep.subr.mxu0 0.0
      %1020 = vmatpush1.msra.mxu0 0.0
      %1021 = vmatprep.subr.mxu0 0.0
      %1022 = vmatpush1.msra.mxu0 0.0
      %1023 = vmatprep.subr.mxu0 0.0
      %1024 = vmatpush1.msra.mxu0 0.0
      %1025 = vmatprep.subr.mxu0 0.0
      %1026 = vmatpush1.msra.mxu0 0.0
      %1027 = vmatprep.subr.mxu0 0.0
      %1028 = vmatpush1.msra.mxu0 0.0
      %1029 = vmatprep.subr.mxu0 0.0
      %1030 = vmatpush1.msra.mxu0 0.0
      %1031 = vmatprep.subr.mxu0 0.0
      %1032 = vmatpush1.msra.mxu0 0.0
      %1033 = vmatprep.subr.mxu0 0.0
      %1034 = vmatpush1.msra.mxu0 0.0
      %1035 = vmatprep.subr.mxu0 0.0
      %1036 = vmatpush1.msra.mxu0 0.0
      %1037 = vmatprep.subr.mxu0 0.0
      %1038 = vmatpush1.msra.mxu0 0.0
      %1039 = vmatprep.subr.mxu0 0.0
      %1040 = vmatpush1.msra.mxu0 0.0
      %1041 = vmatprep.subr.mxu0 0.0
      %1042 = vmatpush1.msra.mxu0 0.0
      %1043 = vmatprep.subr.mxu0 0.0
      %1044 = vmatpush1.msra.mxu0 0.0
      %1045 = vmatprep.subr.mxu0 0.0
      %1046 = vmatpush1.msra.mxu0 0.0
      %1047 = vmatprep.subr.mxu0 0.0
      %1048 = vmatpush1.msra.mxu0 0.0
      %1049 = vmatprep.subr.mxu0 0.0
      %1050 = vmatpush1.msra.mxu0 0.0
      %1051 = vmatprep.subr.mxu0 0.0
      %1052 = vmatpush1.msra.mxu0 0.0
      %1053 = vmatprep.mubr.f32.mxu0 0.0
      %1054 = vmatmul.mubr.f32.gmra.mrb[0].mxu0 %v987
      %v1055 = vpop.f32.mrb[0].mxu0
      %v1056 = vadd.f32 %v306, %v1055
      %v1057 = vpop.f32.mrb[0].mxu0
      %1058 = vdwg.mxu0
      %v1060 = vrot.slane %v336, 5
      %v1063 = vsel %vm341, %v1056, 0
      %1065 = vmatprep.subr.mxu0 0.0
      %1066 = vmatpush1.msra.mxu0 %v332
      %1067 = vmatprep.subr.mxu0 0.0
      %1068 = vmatpush1.msra.mxu0 %v333
      %1069 = vmatprep.subr.mxu0 0.0
      %1070 = vmatpush1.msra.mxu0 %v334
      %1071 = vmatprep.subr.mxu0 0.0
      %1072 = vmatpush1.msra.mxu0 %v335
      %1073 = vmatprep.subr.mxu0 0.0
      %1074 = vmatpush1.msra.mxu0 0.0
      %1075 = vmatprep.subr.mxu0 0.0
      %1076 = vmatpush1.msra.mxu0 0.0
      %1077 = vmatprep.subr.mxu0 0.0
      %1078 = vmatpush1.msra.mxu0 0.0
      %1079 = vmatprep.subr.mxu0 0.0
      %1080 = vmatpush1.msra.mxu0 0.0
      %1081 = vmatprep.subr.mxu0 0.0
      %1082 = vmatpush1.msra.mxu0 0.0
      %1083 = vmatprep.subr.mxu0 0.0
      %1084 = vmatpush1.msra.mxu0 0.0
      %1085 = vmatprep.subr.mxu0 0.0
      %1086 = vmatpush1.msra.mxu0 0.0
      %1087 = vmatprep.subr.mxu0 0.0
      %1088 = vmatpush1.msra.mxu0 0.0
      %1089 = vmatprep.subr.mxu0 0.0
      %1090 = vmatpush1.msra.mxu0 0.0
      %1091 = vmatprep.subr.mxu0 0.0
      %1092 = vmatpush1.msra.mxu0 0.0
      %1093 = vmatprep.subr.mxu0 0.0
      %1094 = vmatpush1.msra.mxu0 0.0
      %1095 = vmatprep.subr.mxu0 0.0
      %1096 = vmatpush1.msra.mxu0 0.0
      %1097 = vmatprep.subr.mxu0 0.0
      %1098 = vmatpush1.msra.mxu0 0.0
      %1099 = vmatprep.subr.mxu0 0.0
      %1100 = vmatpush1.msra.mxu0 0.0
      %1101 = vmatprep.subr.mxu0 0.0
      %1102 = vmatpush1.msra.mxu0 0.0
      %1103 = vmatprep.subr.mxu0 0.0
      %1104 = vmatpush1.msra.mxu0 0.0
      %1105 = vmatprep.subr.mxu0 0.0
      %1106 = vmatpush1.msra.mxu0 0.0
      %1107 = vmatprep.subr.mxu0 0.0
      %1108 = vmatpush1.msra.mxu0 0.0
      %1109 = vmatprep.subr.mxu0 0.0
      %1110 = vmatpush1.msra.mxu0 0.0
      %1111 = vmatprep.subr.mxu0 0.0
      %1112 = vmatpush1.msra.mxu0 0.0
      %1113 = vmatprep.subr.mxu0 0.0
      %1114 = vmatpush1.msra.mxu0 0.0
      %1115 = vmatprep.subr.mxu0 0.0
      %1116 = vmatpush1.msra.mxu0 0.0
      %1117 = vmatprep.subr.mxu0 0.0
      %1118 = vmatpush1.msra.mxu0 0.0
      %1119 = vmatprep.subr.mxu0 0.0
      %1120 = vmatpush1.msra.mxu0 0.0
      %1121 = vmatprep.subr.mxu0 0.0
      %1122 = vmatpush1.msra.mxu0 0.0
      %1123 = vmatprep.subr.mxu0 0.0
      %1124 = vmatpush1.msra.mxu0 0.0
      %1125 = vmatprep.subr.mxu0 0.0
      %1126 = vmatpush1.msra.mxu0 0.0
      %1127 = vmatprep.subr.mxu0 0.0
      %1128 = vmatpush1.msra.mxu0 0.0
      %1129 = vmatprep.mubr.f32.mxu0 0.0
      %1130 = vmatmul.mubr.f32.gmra.mrb[0].mxu0 %v1063
      %v1131 = vpop.f32.mrb[0].mxu0
      %v1132 = vadd.f32 %v1060, %v1131
      %v1133 = vpop.f32.mrb[0].mxu0
      %1134 = vdwg.mxu0
      %1136 = vrot.lane.b32.xlu0 %v970, 4
      %v1137 = vpop.permute.xlu0 %1136
      %vm1139 = vcmask 31744
      %v1140 = vsel %vm1139, %v1132, %v1137
      %vm1141 = vcmask 97280
      %v1142 = vsel %vm1141, %v1140, 0.0
      %1143 = vst [vmem:[%s305] sm:$0x1] %v1142
      %v1145 = vsel %vm341, %v310, 0
      %1147 = vmatprep.subr.mxu0 0.0
      %1148 = vmatpush1.msra.mxu0 %v320
      %1149 = vmatprep.subr.mxu0 0.0
      %1150 = vmatpush1.msra.mxu0 %v321
      %1151 = vmatprep.subr.mxu0 0.0
      %1152 = vmatpush1.msra.mxu0 %v322
      %1153 = vmatprep.subr.mxu0 0.0
      %1154 = vmatpush1.msra.mxu0 %v323
      %1155 = vmatprep.subr.mxu0 0.0
      %1156 = vmatpush1.msra.mxu0 0.0
      %1157 = vmatprep.subr.mxu0 0.0
      %1158 = vmatpush1.msra.mxu0 0.0
      %1159 = vmatprep.subr.mxu0 0.0
      %1160 = vmatpush1.msra.mxu0 0.0
      %1161 = vmatprep.subr.mxu0 0.0
      %1162 = vmatpush1.msra.mxu0 0.0
      %1163 = vmatprep.subr.mxu0 0.0
      %1164 = vmatpush1.msra.mxu0 0.0
      %1165 = vmatprep.subr.mxu0 0.0
      %1166 = vmatpush1.msra.mxu0 0.0
      %1167 = vmatprep.subr.mxu0 0.0
      %1168 = vmatpush1.msra.mxu0 0.0
      %1169 = vmatprep.subr.mxu0 0.0
      %1170 = vmatpush1.msra.mxu0 0.0
      %1171 = vmatprep.subr.mxu0 0.0
      %1172 = vmatpush1.msra.mxu0 0.0
      %1173 = vmatprep.subr.mxu0 0.0
      %1174 = vmatpush1.msra.mxu0 0.0
      %1175 = vmatprep.subr.mxu0 0.0
      %1176 = vmatpush1.msra.mxu0 0.0
      %1177 = vmatprep.subr.mxu0 0.0
      %1178 = vmatpush1.msra.mxu0 0.0
      %1179 = vmatprep.subr.mxu0 0.0
      %1180 = vmatpush1.msra.mxu0 0.0
      %1181 = vmatprep.subr.mxu0 0.0
      %1182 = vmatpush1.msra.mxu0 0.0
      %1183 = vmatprep.subr.mxu0 0.0
      %1184 = vmatpush1.msra.mxu0 0.0
      %1185 = vmatprep.subr.mxu0 0.0
      %1186 = vmatpush1.msra.mxu0 0.0
      %1187 = vmatprep.subr.mxu0 0.0
      %1188 = vmatpush1.msra.mxu0 0.0
      %1189 = vmatprep.subr.mxu0 0.0
      %1190 = vmatpush1.msra.mxu0 0.0
      %1191 = vmatprep.subr.mxu0 0.0
      %1192 = vmatpush1.msra.mxu0 0.0
      %1193 = vmatprep.subr.mxu0 0.0
      %1194 = vmatpush1.msra.mxu0 0.0
      %1195 = vmatprep.subr.mxu0 0.0
      %1196 = vmatpush1.msra.mxu0 0.0
      %1197 = vmatprep.subr.mxu0 0.0
      %1198 = vmatpush1.msra.mxu0 0.0
      %1199 = vmatprep.subr.mxu0 0.0
      %1200 = vmatpush1.msra.mxu0 0.0
      %1201 = vmatprep.subr.mxu0 0.0
      %1202 = vmatpush1.msra.mxu0 0.0
      %1203 = vmatprep.subr.mxu0 0.0
      %1204 = vmatpush1.msra.mxu0 0.0
      %1205 = vmatprep.subr.mxu0 0.0
      %1206 = vmatpush1.msra.mxu0 0.0
      %1207 = vmatprep.subr.mxu0 0.0
      %1208 = vmatpush1.msra.mxu0 0.0
      %1209 = vmatprep.subr.mxu0 0.0
      %1210 = vmatpush1.msra.mxu0 0.0
      %1211 = vmatprep.mubr.f32.mxu0 0.0
      %1212 = vmatmul.mubr.f32.gmra.mrb[0].mxu0 %v1145
      %v1213 = vpop.f32.mrb[0].mxu0
      %v1214 = vadd.f32 %v593, %v1213
      %v1215 = vpop.f32.mrb[0].mxu0
      %1216 = vdwg.mxu0
      %v1217 = vmax.f32 %v1214, 0.0
      %v1219 = vsel %vm341, %v1217, 0
      %1221 = vmatprep.subr.mxu0 0.0
      %1222 = vmatpush1.msra.mxu0 %v324
      %1223 = vmatprep.subr.mxu0 0.0
      %1224 = vmatpush1.msra.mxu0 %v325
      %1225 = vmatprep.subr.mxu0 0.0
      %1226 = vmatpush1.msra.mxu0 %v326
      %1227 = vmatprep.subr.mxu0 0.0
      %1228 = vmatpush1.msra.mxu0 %v327
      %1229 = vmatprep.subr.mxu0 0.0
      %1230 = vmatpush1.msra.mxu0 0.0
      %1231 = vmatprep.subr.mxu0 0.0
      %1232 = vmatpush1.msra.mxu0 0.0
      %1233 = vmatprep.subr.mxu0 0.0
      %1234 = vmatpush1.msra.mxu0 0.0
      %1235 = vmatprep.subr.mxu0 0.0
      %1236 = vmatpush1.msra.mxu0 0.0
      %1237 = vmatprep.subr.mxu0 0.0
      %1238 = vmatpush1.msra.mxu0 0.0
      %1239 = vmatprep.subr.mxu0 0.0
      %1240 = vmatpush1.msra.mxu0 0.0
      %1241 = vmatprep.subr.mxu0 0.0
      %1242 = vmatpush1.msra.mxu0 0.0
      %1243 = vmatprep.subr.mxu0 0.0
      %1244 = vmatpush1.msra.mxu0 0.0
      %1245 = vmatprep.subr.mxu0 0.0
      %1246 = vmatpush1.msra.mxu0 0.0
      %1247 = vmatprep.subr.mxu0 0.0
      %1248 = vmatpush1.msra.mxu0 0.0
      %1249 = vmatprep.subr.mxu0 0.0
      %1250 = vmatpush1.msra.mxu0 0.0
      %1251 = vmatprep.subr.mxu0 0.0
      %1252 = vmatpush1.msra.mxu0 0.0
      %1253 = vmatprep.subr.mxu0 0.0
      %1254 = vmatpush1.msra.mxu0 0.0
      %1255 = vmatprep.subr.mxu0 0.0
      %1256 = vmatpush1.msra.mxu0 0.0
      %1257 = vmatprep.subr.mxu0 0.0
      %1258 = vmatpush1.msra.mxu0 0.0
      %1259 = vmatprep.subr.mxu0 0.0
      %1260 = vmatpush1.msra.mxu0 0.0
      %1261 = vmatprep.subr.mxu0 0.0
      %1262 = vmatpush1.msra.mxu0 0.0
      %1263 = vmatprep.subr.mxu0 0.0
      %1264 = vmatpush1.msra.mxu0 0.0
      %1265 = vmatprep.subr.mxu0 0.0
      %1266 = vmatpush1.msra.mxu0 0.0
      %1267 = vmatprep.subr.mxu0 0.0
      %1268 = vmatpush1.msra.mxu0 0.0
      %1269 = vmatprep.subr.mxu0 0.0
      %1270 = vmatpush1.msra.mxu0 0.0
      %1271 = vmatprep.subr.mxu0 0.0
      %1272 = vmatpush1.msra.mxu0 0.0
      %1273 = vmatprep.subr.mxu0 0.0
      %1274 = vmatpush1.msra.mxu0 0.0
      %1275 = vmatprep.subr.mxu0 0.0
      %1276 = vmatpush1.msra.mxu0 0.0
      %1277 = vmatprep.subr.mxu0 0.0
      %1278 = vmatpush1.msra.mxu0 0.0
      %1279 = vmatprep.subr.mxu0 0.0
      %1280 = vmatpush1.msra.mxu0 0.0
      %1281 = vmatprep.subr.mxu0 0.0
      %1282 = vmatpush1.msra.mxu0 0.0
      %1283 = vmatprep.subr.mxu0 0.0
      %1284 = vmatpush1.msra.mxu0 0.0
      %1285 = vmatprep.mubr.f32.mxu0 0.0
      %1286 = vmatmul.mubr.f32.gmra.mrb[0].mxu0 %v1219
      %v1287 = vpop.f32.mrb[0].mxu0
      %v1288 = vadd.f32 %v671, %v1287
      %v1289 = vpop.f32.mrb[0].mxu0
      %1290 = vdwg.mxu0
      %v1291 = vmax.f32 %v1288, 0.0
      %v1293 = vsel %vm341, %v1291, 0
      %1295 = vmatprep.subr.mxu0 0.0
      %1296 = vmatpush1.msra.mxu0 %v328
      %1297 = vmatprep.subr.mxu0 0.0
      %1298 = vmatpush1.msra.mxu0 %v329
      %1299 = vmatprep.subr.mxu0 0.0
      %1300 = vmatpush1.msra.mxu0 %v330
      %1301 = vmatprep.subr.mxu0 0.0
      %1302 = vmatpush1.msra.mxu0 %v331
      %1303 = vmatprep.subr.mxu0 0.0
      %1304 = vmatpush1.msra.mxu0 0.0
      %1305 = vmatprep.subr.mxu0 0.0
      %1306 = vmatpush1.msra.mxu0 0.0
      %1307 = vmatprep.subr.mxu0 0.0
      %1308 = vmatpush1.msra.mxu0 0.0
      %1309 = vmatprep.subr.mxu0 0.0
      %1310 = vmatpush1.msra.mxu0 0.0
      %1311 = vmatprep.subr.mxu0 0.0
      %1312 = vmatpush1.msra.mxu0 0.0
      %1313 = vmatprep.subr.mxu0 0.0
      %1314 = vmatpush1.msra.mxu0 0.0
      %1315 = vmatprep.subr.mxu0 0.0
      %1316 = vmatpush1.msra.mxu0 0.0
      %1317 = vmatprep.subr.mxu0 0.0
      %1318 = vmatpush1.msra.mxu0 0.0
      %1319 = vmatprep.subr.mxu0 0.0
      %1320 = vmatpush1.msra.mxu0 0.0
      %1321 = vmatprep.subr.mxu0 0.0
      %1322 = vmatpush1.msra.mxu0 0.0
      %1323 = vmatprep.subr.mxu0 0.0
      %1324 = vmatpush1.msra.mxu0 0.0
      %1325 = vmatprep.subr.mxu0 0.0
      %1326 = vmatpush1.msra.mxu0 0.0
      %1327 = vmatprep.subr.mxu0 0.0
      %1328 = vmatpush1.msra.mxu0 0.0
      %1329 = vmatprep.subr.mxu0 0.0
      %1330 = vmatpush1.msra.mxu0 0.0
      %1331 = vmatprep.subr.mxu0 0.0
      %1332 = vmatpush1.msra.mxu0 0.0
      %1333 = vmatprep.subr.mxu0 0.0
      %1334 = vmatpush1.msra.mxu0 0.0
      %1335 = vmatprep.subr.mxu0 0.0
      %1336 = vmatpush1.msra.mxu0 0.0
      %1337 = vmatprep.subr.mxu0 0.0
      %1338 = vmatpush1.msra.mxu0 0.0
      %1339 = vmatprep.subr.mxu0 0.0
      %1340 = vmatpush1.msra.mxu0 0.0
      %1341 = vmatprep.subr.mxu0 0.0
      %1342 = vmatpush1.msra.mxu0 0.0
      %1343 = vmatprep.subr.mxu0 0.0
      %1344 = vmatpush1.msra.mxu0 0.0
      %1345 = vmatprep.subr.mxu0 0.0
      %1346 = vmatpush1.msra.mxu0 0.0
      %1347 = vmatprep.subr.mxu0 0.0
      %1348 = vmatpush1.msra.mxu0 0.0
      %1349 = vmatprep.subr.mxu0 0.0
      %1350 = vmatpush1.msra.mxu0 0.0
      %1351 = vmatprep.subr.mxu0 0.0
      %1352 = vmatpush1.msra.mxu0 0.0
      %1353 = vmatprep.subr.mxu0 0.0
      %1354 = vmatpush1.msra.mxu0 0.0
      %1355 = vmatprep.subr.mxu0 0.0
      %1356 = vmatpush1.msra.mxu0 0.0
      %1357 = vmatprep.subr.mxu0 0.0
      %1358 = vmatpush1.msra.mxu0 0.0
      %1359 = vmatprep.mubr.f32.mxu0 0.0
      %1360 = vmatmul.mubr.f32.gmra.mrb[0].mxu0 %v1293
      %v1361 = vpop.f32.mrb[0].mxu0
      %v1362 = vadd.f32 %v749, %v1361
      %v1363 = vpop.f32.mrb[0].mxu0
      %1364 = vdwg.mxu0
      %v1365 = vrot.slane %v499, 1
      %v1367 = vrot.slane %v501, 1
      %v1369 = vsel %vm341, %v1365, 0
      %1371 = vmatprep.subr.mxu0 0.0
      %1372 = vmatpush1.xpose.msra.mxu0 %v1293
      %1373 = vmatprep.subr.mxu0 0.0
      %1374 = vmatpush1.xpose.msra.mxu0 0.0
      %1375 = vmatprep.subr.mxu0 0.0
      %1376 = vmatpush1.xpose.msra.mxu0 0.0
      %1377 = vmatprep.subr.mxu0 0.0
      %1378 = vmatpush1.xpose.msra.mxu0 0.0
      %1379 = vmatprep.subr.mxu0 0.0
      %1380 = vmatpush1.xpose.msra.mxu0 0.0
      %1381 = vmatprep.subr.mxu0 0.0
      %1382 = vmatpush1.xpose.msra.mxu0 0.0
      %1383 = vmatprep.subr.mxu0 0.0
      %1384 = vmatpush1.xpose.msra.mxu0 0.0
      %1385 = vmatprep.subr.mxu0 0.0
      %1386 = vmatpush1.xpose.msra.mxu0 0.0
      %1387 = vmatprep.subr.mxu0 0.0
      %1388 = vmatpush1.xpose.msra.mxu0 0.0
      %1389 = vmatprep.subr.mxu0 0.0
      %1390 = vmatpush1.xpose.msra.mxu0 0.0
      %1391 = vmatprep.subr.mxu0 0.0
      %1392 = vmatpush1.xpose.msra.mxu0 0.0
      %1393 = vmatprep.subr.mxu0 0.0
      %1394 = vmatpush1.xpose.msra.mxu0 0.0
      %1395 = vmatprep.subr.mxu0 0.0
      %1396 = vmatpush1.xpose.msra.mxu0 0.0
      %1397 = vmatprep.subr.mxu0 0.0
      %1398 = vmatpush1.xpose.msra.mxu0 0.0
      %1399 = vmatprep.subr.mxu0 0.0
      %1400 = vmatpush1.xpose.msra.mxu0 0.0
      %1401 = vmatprep.subr.mxu0 0.0
      %1402 = vmatpush1.xpose.msra.mxu0 0.0
      %1403 = vmatprep.subr.mxu0 0.0
      %1404 = vmatpush1.xpose.msra.mxu0 0.0
      %1405 = vmatprep.subr.mxu0 0.0
      %1406 = vmatpush1.xpose.msra.mxu0 0.0
      %1407 = vmatprep.subr.mxu0 0.0
      %1408 = vmatpush1.xpose.msra.mxu0 0.0
      %1409 = vmatprep.subr.mxu0 0.0
      %1410 = vmatpush1.xpose.msra.mxu0 0.0
      %1411 = vmatprep.subr.mxu0 0.0
      %1412 = vmatpush1.xpose.msra.mxu0 0.0
      %1413 = vmatprep.subr.mxu0 0.0
      %1414 = vmatpush1.xpose.msra.mxu0 0.0
      %1415 = vmatprep.subr.mxu0 0.0
      %1416 = vmatpush1.xpose.msra.mxu0 0.0
      %1417 = vmatprep.subr.mxu0 0.0
      %1418 = vmatpush1.xpose.msra.mxu0 0.0
      %1419 = vmatprep.subr.mxu0 0.0
      %1420 = vmatpush1.xpose.msra.mxu0 0.0
      %1421 = vmatprep.subr.mxu0 0.0
      %1422 = vmatpush1.xpose.msra.mxu0 0.0
      %1423 = vmatprep.subr.mxu0 0.0
      %1424 = vmatpush1.xpose.msra.mxu0 0.0
      %1425 = vmatprep.subr.mxu0 0.0
      %1426 = vmatpush1.xpose.msra.mxu0 0.0
      %1427 = vmatprep.subr.mxu0 0.0
      %1428 = vmatpush1.xpose.msra.mxu0 0.0
      %1429 = vmatprep.subr.mxu0 0.0
      %1430 = vmatpush1.xpose.msra.mxu0 0.0
      %1431 = vmatprep.subr.mxu0 0.0
      %1432 = vmatpush1.xpose.msra.mxu0 0.0
      %1433 = vmatprep.subr.mxu0 0.0
      %1434 = vmatpush1.xpose.msra.mxu0 0.0
      %1435 = vmatprep.mubr.f32.mxu0 0.0
      %1436 = vmatmul.mubr.f32.gmra.mrb[0].mxu0 %v1369
      %v1437 = vpop.f32.mrb[0].mxu0
      %v1438 = vadd.f32 %v1367, %v1437
      %v1439 = vpop.f32.mrb[0].mxu0
      %1440 = vdwg.mxu0
      %v1441 = vrot.slane %v493, 3
      %v1442 = vsel %vm341, %v1441, 0
      %v1445 = vsel %vm341, %v1362, 0
      %1447 = vmatprep.subr.mxu0 0.0
      %1448 = vmatpush1.xpose.msra.mxu0 %v1445
      %1449 = vmatprep.subr.mxu0 0.0
      %1450 = vmatpush1.xpose.msra.mxu0 0.0
      %1451 = vmatprep.subr.mxu0 0.0
      %1452 = vmatpush1.xpose.msra.mxu0 0.0
      %1453 = vmatprep.subr.mxu0 0.0
      %1454 = vmatpush1.xpose.msra.mxu0 0.0
      %1455 = vmatprep.subr.mxu0 0.0
      %1456 = vmatpush1.xpose.msra.mxu0 0.0
      %1457 = vmatprep.subr.mxu0 0.0
      %1458 = vmatpush1.xpose.msra.mxu0 0.0
      %1459 = vmatprep.subr.mxu0 0.0
      %1460 = vmatpush1.xpose.msra.mxu0 0.0
      %1461 = vmatprep.subr.mxu0 0.0
      %1462 = vmatpush1.xpose.msra.mxu0 0.0
      %1463 = vmatprep.subr.mxu0 0.0
      %1464 = vmatpush1.xpose.msra.mxu0 0.0
      %1465 = vmatprep.subr.mxu0 0.0
      %1466 = vmatpush1.xpose.msra.mxu0 0.0
      %1467 = vmatprep.subr.mxu0 0.0
      %1468 = vmatpush1.xpose.msra.mxu0 0.0
      %1469 = vmatprep.subr.mxu0 0.0
      %1470 = vmatpush1.xpose.msra.mxu0 0.0
      %1471 = vmatprep.subr.mxu0 0.0
      %1472 = vmatpush1.xpose.msra.mxu0 0.0
      %1473 = vmatprep.subr.mxu0 0.0
      %1474 = vmatpush1.xpose.msra.mxu0 0.0
      %1475 = vmatprep.subr.mxu0 0.0
      %1476 = vmatpush1.xpose.msra.mxu0 0.0
      %1477 = vmatprep.subr.mxu0 0.0
      %1478 = vmatpush1.xpose.msra.mxu0 0.0
      %1479 = vmatprep.subr.mxu0 0.0
      %1480 = vmatpush1.xpose.msra.mxu0 0.0
      %1481 = vmatprep.subr.mxu0 0.0
      %1482 = vmatpush1.xpose.msra.mxu0 0.0
      %1483 = vmatprep.subr.mxu0 0.0
      %1484 = vmatpush1.xpose.msra.mxu0 0.0
      %1485 = vmatprep.subr.mxu0 0.0
      %1486 = vmatpush1.xpose.msra.mxu0 0.0
      %1487 = vmatprep.subr.mxu0 0.0
      %1488 = vmatpush1.xpose.msra.mxu0 0.0
      %1489 = vmatprep.subr.mxu0 0.0
      %1490 = vmatpush1.xpose.msra.mxu0 0.0
      %1491 = vmatprep.subr.mxu0 0.0
      %1492 = vmatpush1.xpose.msra.mxu0 0.0
      %1493 = vmatprep.subr.mxu0 0.0
      %1494 = vmatpush1.xpose.msra.mxu0 0.0
      %1495 = vmatprep.subr.mxu0 0.0
      %1496 = vmatpush1.xpose.msra.mxu0 0.0
      %1497 = vmatprep.subr.mxu0 0.0
      %1498 = vmatpush1.xpose.msra.mxu0 0.0
      %1499 = vmatprep.subr.mxu0 0.0
      %1500 = vmatpush1.xpose.msra.mxu0 0.0
      %1501 = vmatprep.subr.mxu0 0.0
      %1502 = vmatpush1.xpose.msra.mxu0 0.0
      %1503 = vmatprep.subr.mxu0 0.0
      %1504 = vmatpush1.xpose.msra.mxu0 0.0
      %1505 = vmatprep.subr.mxu0 0.0
      %1506 = vmatpush1.xpose.msra.mxu0 0.0
      %1507 = vmatprep.subr.mxu0 0.0
      %1508 = vmatpush1.xpose.msra.mxu0 0.0
      %1509 = vmatprep.subr.mxu0 0.0
      %1510 = vmatpush1.xpose.msra.mxu0 0.0
      %1511 = vmatprep.mubr.f32.mxu0 0.0
      %1512 = vmatmul.mubr.f32.gmra.mrb[0].mxu0 %v1442
      %v1513 = vpop.f32.mrb[0].mxu0
      %v1514 = vadd.f32 %v1367, %v1513
      %v1515 = vpop.f32.mrb[0].mxu0
      %1516 = vdwg.mxu0
      %v1517 = vsel %vm973, %v1438, -inf
      %1518 = vmax.xlane.f32.xlu0 %v1517
      %v1519 = vpop.xlane.xlu0 %1518
      %v1520 = vsub.f32 %v1438, %v1519
      %v1521 = vmul.f32 %v1520, 1.442695
      %v1522 = vpow.pop %v1521
      %v1523 = vsel %vm973, %v1522, 0.0
      %1524 = vadd.xlane.f32.xlu0 %v1523
      %v1525 = vpop.xlane.xlu0 %1524
      %v1526 = vrcp.pop %v1525
      %v1527 = vmul.f32 %v1522, %v1526
      %v1528 = vrot.slane %v306, 1
      %v1531 = vsel %vm985, %v1527, 0
      %1533 = vmatprep.subr.mxu0 0.0
      %1534 = vmatpush1.msra.mxu0 %v310
      %1535 = vmatprep.subr.mxu0 0.0
      %1536 = vmatpush1.msra.mxu0 0.0
      %1537 = vmatprep.subr.mxu0 0.0
      %1538 = vmatpush1.msra.mxu0 0.0
      %1539 = vmatprep.subr.mxu0 0.0
      %1540 = vmatpush1.msra.mxu0 0.0
      %1541 = vmatprep.subr.mxu0 0.0
      %1542 = vmatpush1.msra.mxu0 0.0
      %1543 = vmatprep.subr.mxu0 0.0
      %1544 = vmatpush1.msra.mxu0 0.0
      %1545 = vmatprep.subr.mxu0 0.0
      %1546 = vmatpush1.msra.mxu0 0.0
      %1547 = vmatprep.subr.mxu0 0.0
      %1548 = vmatpush1.msra.mxu0 0.0
      %1549 = vmatprep.subr.mxu0 0.0
      %1550 = vmatpush1.msra.mxu0 0.0
      %1551 = vmatprep.subr.mxu0 0.0
      %1552 = vmatpush1.msra.mxu0 0.0
      %1553 = vmatprep.subr.mxu0 0.0
      %1554 = vmatpush1.msra.mxu0 0.0
      %1555 = vmatprep.subr.mxu0 0.0
      %1556 = vmatpush1.msra.mxu0 0.0
      %1557 = vmatprep.subr.mxu0 0.0
      %1558 = vmatpush1.msra.mxu0 0.0
      %1559 = vmatprep.subr.mxu0 0.0
      %1560 = vmatpush1.msra.mxu0 0.0
      %1561 = vmatprep.subr.mxu0 0.0
      %1562 = vmatpush1.msra.mxu0 0.0
      %1563 = vmatprep.subr.mxu0 0.0
      %1564 = vmatpush1.msra.mxu0 0.0
      %1565 = vmatprep.subr.mxu0 0.0
      %1566 = vmatpush1.msra.mxu0 0.0
      %1567 = vmatprep.subr.mxu0 0.0
      %1568 = vmatpush1.msra.mxu0 0.0
      %1569 = vmatprep.subr.mxu0 0.0
      %1570 = vmatpush1.msra.mxu0 0.0
      %1571 = vmatprep.subr.mxu0 0.0
      %1572 = vmatpush1.msra.mxu0 0.0
      %1573 = vmatprep.subr.mxu0 0.0
      %1574 = vmatpush1.msra.mxu0 0.0
      %1575 = vmatprep.subr.mxu0 0.0
      %1576 = vmatpush1.msra.mxu0 0.0
      %1577 = vmatprep.subr.mxu0 0.0
      %1578 = vmatpush1.msra.mxu0 0.0
      %1579 = vmatprep.subr.mxu0 0.0
      %1580 = vmatpush1.msra.mxu0 0.0
      %1581 = vmatprep.subr.mxu0 0.0
      %1582 = vmatpush1.msra.mxu0 0.0
      %1583 = vmatprep.subr.mxu0 0.0
      %1584 = vmatpush1.msra.mxu0 0.0
      %1585 = vmatprep.subr.mxu0 0.0
      %1586 = vmatpush1.msra.mxu0 0.0
      %1587 = vmatprep.subr.mxu0 0.0
      %1588 = vmatpush1.msra.mxu0 0.0
      %1589 = vmatprep.subr.mxu0 0.0
      %1590 = vmatpush1.msra.mxu0 0.0
      %1591 = vmatprep.subr.mxu0 0.0
      %1592 = vmatpush1.msra.mxu0 0.0
      %1593 = vmatprep.subr.mxu0 0.0
      %1594 = vmatpush1.msra.mxu0 0.0
      %1595 = vmatprep.subr.mxu0 0.0
      %1596 = vmatpush1.msra.mxu0 0.0
      %1597 = vmatprep.mubr.f32.mxu0 0.0
      %1598 = vmatmul.mubr.f32.gmra.mrb[0].mxu0 %v1531
      %v1599 = vpop.f32.mrb[0].mxu0
      %v1600 = vadd.f32 %v1528, %v1599
      %v1601 = vpop.f32.mrb[0].mxu0
      %1602 = vdwg.mxu0
      %v1604 = vsel %vm341, %v1600, 0
      %1606 = vmatprep.subr.mxu0 0.0
      %1607 = vmatpush1.msra.mxu0 %v332
      %1608 = vmatprep.subr.mxu0 0.0
      %1609 = vmatpush1.msra.mxu0 %v333
      %1610 = vmatprep.subr.mxu0 0.0
      %1611 = vmatpush1.msra.mxu0 %v334
      %1612 = vmatprep.subr.mxu0 0.0
      %1613 = vmatpush1.msra.mxu0 %v335
      %1614 = vmatprep.subr.mxu0 0.0
      %1615 = vmatpush1.msra.mxu0 0.0
      %1616 = vmatprep.subr.mxu0 0.0
      %1617 = vmatpush1.msra.mxu0 0.0
      %1618 = vmatprep.subr.mxu0 0.0
      %1619 = vmatpush1.msra.mxu0 0.0
      %1620 = vmatprep.subr.mxu0 0.0
      %1621 = vmatpush1.msra.mxu0 0.0
      %1622 = vmatprep.subr.mxu0 0.0
      %1623 = vmatpush1.msra.mxu0 0.0
      %1624 = vmatprep.subr.mxu0 0.0
      %1625 = vmatpush1.msra.mxu0 0.0
      %1626 = vmatprep.subr.mxu0 0.0
      %1627 = vmatpush1.msra.mxu0 0.0
      %1628 = vmatprep.subr.mxu0 0.0
      %1629 = vmatpush1.msra.mxu0 0.0
      %1630 = vmatprep.subr.mxu0 0.0
      %1631 = vmatpush1.msra.mxu0 0.0
      %1632 = vmatprep.subr.mxu0 0.0
      %1633 = vmatpush1.msra.mxu0 0.0
      %1634 = vmatprep.subr.mxu0 0.0
      %1635 = vmatpush1.msra.mxu0 0.0
      %1636 = vmatprep.subr.mxu0 0.0
      %1637 = vmatpush1.msra.mxu0 0.0
      %1638 = vmatprep.subr.mxu0 0.0
      %1639 = vmatpush1.msra.mxu0 0.0
      %1640 = vmatprep.subr.mxu0 0.0
      %1641 = vmatpush1.msra.mxu0 0.0
      %1642 = vmatprep.subr.mxu0 0.0
      %1643 = vmatpush1.msra.mxu0 0.0
      %1644 = vmatprep.subr.mxu0 0.0
      %1645 = vmatpush1.msra.mxu0 0.0
      %1646 = vmatprep.subr.mxu0 0.0
      %1647 = vmatpush1.msra.mxu0 0.0
      %1648 = vmatprep.subr.mxu0 0.0
      %1649 = vmatpush1.msra.mxu0 0.0
      %1650 = vmatprep.subr.mxu0 0.0
      %1651 = vmatpush1.msra.mxu0 0.0
      %1652 = vmatprep.subr.mxu0 0.0
      %1653 = vmatpush1.msra.mxu0 0.0
      %1654 = vmatprep.subr.mxu0 0.0
      %1655 = vmatpush1.msra.mxu0 0.0
      %1656 = vmatprep.subr.mxu0 0.0
      %1657 = vmatpush1.msra.mxu0 0.0
      %1658 = vmatprep.subr.mxu0 0.0
      %1659 = vmatpush1.msra.mxu0 0.0
      %1660 = vmatprep.subr.mxu0 0.0
      %1661 = vmatpush1.msra.mxu0 0.0
      %1662 = vmatprep.subr.mxu0 0.0
      %1663 = vmatpush1.msra.mxu0 0.0
      %1664 = vmatprep.subr.mxu0 0.0
      %1665 = vmatpush1.msra.mxu0 0.0
      %1666 = vmatprep.subr.mxu0 0.0
      %1667 = vmatpush1.msra.mxu0 0.0
      %1668 = vmatprep.subr.mxu0 0.0
      %1669 = vmatpush1.msra.mxu0 0.0
      %1670 = vmatprep.mubr.f32.mxu0 0.0
      %1671 = vmatmul.mubr.f32.gmra.mrb[0].mxu0 %v1604
      %v1672 = vpop.f32.mrb[0].mxu0
      %v1673 = vadd.f32 %v1060, %v1672
      %v1674 = vpop.f32.mrb[0].mxu0
      %1675 = vdwg.mxu0
      %1677 = vrot.lane.b32.xlu0 %v1514, 4
      %v1678 = vpop.permute.xlu0 %1677
      %v1680 = vsel %vm1139, %v1673, %v1678
      %v1681 = vsel %vm1141, %v1680, 0.0
      %1682 = vst [vmem:[%s305 + $0x1] sm:$0x1] %v1681
      %1685 = vrot.lane.b32.xlu0 %v579, 124
      %v1686 = vpop.permute.xlu0 %1685
      %1687 = vrot.lane.b32.xlu0 %v584, 124
      %v1688 = vpop.permute.xlu0 %1687
      %v1691 = vsel %vm985, %v1686, 0.0
      %v1692 = vsel %vm985, %v1688, 0.0
      %1693 = vst [vmem:[%s305 + $0x8] sm:$0xff] %v1691
      %1694 = vst [vmem:[%s305 + $0x10] sm:$0xff] %v1692
      %p1695 = scmp.lt.s32.totalorder %s17, 2
      %s1696 = scalar_select %p1695, %s17, 2
      %s1697 = smul.addr %s1696, 3
      %s1698 = smul.addr %s1697, 8
      %s1699 = scalar_lea.vmem %s6, %s1698
      // Predicated region
      $region45: #{history_selection_forward.1} parent=43 // pred_check
        %p1700 = pneg %p181
      $region46: #{history_selection_forward.1} parent=43 // pred_check_branch
        %1702 = sbr.rel (%p1700) target = $region48
      $region47: #{history_selection_forward.1} parent=43 // pred_region
        _
      $region48: #{history_selection_forward.1} parent=43 // pred_fallthru
        _
    $region44: #{history_selection_forward.1} parent=5 // pred_fallthru
      _
    %p1703 = scmp.le.s32.totalorder 2, %s12
    // Predicated region
    $region49: #{history_selection_forward.1} parent=5 // pred_check
      %p1704 = pneg %p1703
    $region50: #{history_selection_forward.1} parent=5 // pred_check_branch
      %1706 = sbr.rel (%p1704) target = $region52
    $region51: #{history_selection_forward.1} parent=5 // pred_region
      %s1707 = ssub.s32 %s12, 2
      // Predicated region
      $region53: #{history_selection_forward.1} parent=51 // pred_check
        %p1708 = pneg %p187
      $region54: #{history_selection_forward.1} parent=51 // pred_check_branch
        %1710 = sbr.rel (%p1708) target = $region56
      $region55: #{history_selection_forward.1} parent=51 // pred_region
        %p1711 = scmp.lt.s32.totalorder %s18, 2
        %s1712 = scalar_select %p1711, %s18, 2
        %s1713 = smul.addr %s1712, 3
        %s1714 = smul.addr %s1713, 8
        %s1715 = scalar_lea.vmem %s6, %s1714
      $region56: #{history_selection_forward.1} parent=51 // pred_fallthru
        _
    $region52: #{history_selection_forward.1} parent=5 // pred_fallthru
      _
  $region6: #{history_selection_forward.1} parent=0 // loop_footer
    %s16 = sadd.s32 1, %s12
  $region7: #{history_selection_forward.1} parent=0 // loop_footer_branch
    %11 = sbr.rel target = $region3
  $region8: #{history_selection_forward.1} parent=0 // loop_exit
    _

</llo_original>
